<compile_context>
chip_gen: v7x
topology: tpu7x:2x2x1
jax: 0.10.0
libtpu: 0.0.40
codegen_flags: <defaults>
</compile_context>

<pallas_src>
import functools

import jax
import jax.numpy as jnp
from jax.experimental import pallas as pl
from jax.experimental.pallas import tpu as pltpu


# ---------------------------------------------------------------------------
# Fused kernel: one grid step = `nb` full batch items.
#   x_ref  : (nb, C, HW)   input block (lane axis = HW)
#   w1t_ref: (C, C_r)      fc1 weight transposed (f32)
#   w2_ref : (C, C_r)      fc2 weight (f32)
#   wsa_ref: (2*K*K,)      spatial-conv taps, SMEM scalars
#   o_ref  : (nb, C, HW)   output block
#   pa_ref, pm_ref: (nb, 1, (H+2p)*W + 2p) f32 scratch (flat zero-padded maps)
# ---------------------------------------------------------------------------
def _cbam_fused_kernel(x_ref, w1t_ref, w2_ref, wsa_ref, o_ref, pa_ref, pm_ref,
                       *, inv_hw, inv_c, hdim, wdim, ksize, pad):
    hw = hdim * wdim
    xb = x_ref[...]                                        # (nb, C, HW) x.dtype
    xf = xb.astype(jnp.float32)

    # ---------------- channel attention (tiny, f32) ----------------
    avg_c = jnp.sum(xf, axis=2, keepdims=True) * inv_hw    # (nb, C, 1)
    max_c = jnp.max(xf, axis=2, keepdims=True)             # (nb, C, 1)

    w1t = w1t_ref[...]                                     # (C, C_r) f32
    w2 = w2_ref[...]                                       # (C, C_r) f32

    # fc1 + relu for both branches; fc2 is linear & bias-free, so the two
    # relu'd hiddens can be summed before fc2.
    # TODO(synk): for C >= 256 use jnp.dot on the MXU instead of
    # broadcast-multiply + XLU reduces.
    h_avg = jnp.maximum(jnp.sum(avg_c * w1t[None], axis=1, keepdims=True), 0.0)
    h_max = jnp.maximum(jnp.sum(max_c * w1t[None], axis=1, keepdims=True), 0.0)
    hidden = h_avg + h_max                                  # (nb, 1, C_r)
    logits = jnp.sum(w2[None] * hidden, axis=2, keepdims=True)   # (nb, C, 1)
    ca = 1.0 / (1.0 + jnp.exp(-logits))                     # sigmoid, f32

    # ----- apply channel attention; big multiply stays in x.dtype -----
    xs = xb * ca.astype(xb.dtype)                            # (nb, C, HW)

    # channel-wise spatial maps (mean accumulated in f32)
    avg_map = jnp.sum(xs.astype(jnp.float32), axis=1, keepdims=True) * inv_c
    max_map = jnp.max(xs, axis=1, keepdims=True).astype(jnp.float32)

    # ---------------- spatial attention: KxK conv + sigmoid ----------------
    # Maps stay flattened (lane-dense).  Zero-pad into a flat scratch so the
    # tap (ky, kx) is a static lane slice at offset ky*W + kx; a per-kx
    # column mask kills the reads that wrap across row boundaries (vertical
    # out-of-bounds reads land in the zero-padded slack by construction).
    base = pad * wdim + pad
    pa_ref[...] = jnp.zeros_like(pa_ref)
    pm_ref[...] = jnp.zeros_like(pm_ref)
    pa_ref[:, :, pl.ds(base, hw)] = avg_map
    pm_ref[:, :, pl.ds(base, hw)] = max_map

    col = jax.lax.broadcasted_iota(jnp.int32, (1, 1, hw), 2) % wdim

    acc = jnp.zeros(avg_map.shape, jnp.float32)              # (nb, 1, HW)
    for kx in range(ksize):
        valid = (col >= pad - kx) & (col < wdim + pad - kx)
        part = jnp.zeros_like(acc)
        for ky in range(ksize):
            off = ky * wdim + kx
            wa = wsa_ref[ky * ksize + kx]                    # avg-map tap
            wm = wsa_ref[ksize * ksize + ky * ksize + kx]    # max-map tap
            part = part + (wa * pa_ref[:, :, pl.ds(off, hw)]
                           + wm * pm_ref[:, :, pl.ds(off, hw)])
        acc = acc + jnp.where(valid, part, 0.0)
    sa = 1.0 / (1.0 + jnp.exp(-acc))                         # (nb, 1, HW) f32

    # ----- apply spatial attention; big multiply stays in x.dtype -----
    o_ref[...] = (xs * sa.astype(xs.dtype)).astype(o_ref.dtype)


def cbam_forward(x, w_fc1, w_fc2, w_sa, *, target_block_bytes=2 << 20,
                 core_parallel=False):
    """x: (N, C, H, W); w_fc1: (C//r, C); w_fc2: (C, C//r); w_sa: (1, 2, K, K)."""
    n, c, h, w = x.shape
    c_r = w_fc1.shape[0]
    hw = h * w
    ksize = w_sa.shape[-1]
    pad = ksize // 2
    lpad = (h + 2 * pad) * w + 2 * pad        # flat zero-padded map length

    # Batch items per grid step: big enough to amortise per-step overhead,
    # small enough to stay inside scoped VMEM; must divide N.
    per_item = 2 * c * hw * x.dtype.itemsize               # x block + y block
    nb = max(1, min(n, target_block_bytes // max(per_item, 1)))
    while n % nb:
        nb -= 1
    grid = (n // nb,)

    x3 = x.reshape(n, c, hw)                                # free metadata reshape
    w1t = jnp.transpose(w_fc1.reshape(c_r, c)).astype(jnp.float32)   # (C, C_r)
    w2m = w_fc2.reshape(c, c_r).astype(jnp.float32)                  # (C, C_r)
    w_sa_flat = w_sa.reshape(-1).astype(jnp.float32)                 # (2*K*K,)

    kern = functools.partial(_cbam_fused_kernel, inv_hw=1.0 / hw, inv_c=1.0 / c,
                             hdim=h, wdim=w, ksize=ksize, pad=pad)

    # CORE_PARALLEL lets v7x's two TensorCores split the batch axis; plain
    # "parallel" elsewhere (no-op on 1-TC v5e/v6e).
    sem = (pltpu.CORE_PARALLEL,) if core_parallel else ("parallel",)

    # VMEM budget: double-buffered in/out blocks + in-kernel f32 temps +
    # conv scratch; only raise the scoped limit when actually needed.
    block_bytes = nb * c * hw * x.dtype.itemsize
    est = 4 * block_bytes + 8 * nb * c * hw + 8 * nb * lpad + (1 << 20)
    cp_kwargs = dict(dimension_semantics=sem)
    if est > (24 << 20):
        cp_kwargs["vmem_limit_bytes"] = min(int(est), 64 << 20)

    out3 = pl.pallas_call(
        kern,
        out_shape=jax.ShapeDtypeStruct((n, c, hw), x.dtype),
        grid_spec=pltpu.PrefetchScalarGridSpec(
            num_scalar_prefetch=0,
            grid=grid,
            in_specs=[
                pl.BlockSpec((nb, c, hw), lambda i: (i, 0, 0)),
                pl.BlockSpec((c, c_r), lambda i: (0, 0)),
                pl.BlockSpec((c, c_r), lambda i: (0, 0)),
                pl.BlockSpec(memory_space=pltpu.MemorySpace.SMEM),
            ],
            out_specs=pl.BlockSpec((nb, c, hw), lambda i: (i, 0, 0)),
            scratch_shapes=[
                pltpu.VMEM((nb, 1, lpad), jnp.float32),
                pltpu.VMEM((nb, 1, lpad), jnp.float32),
            ],
        ),
        compiler_params=pltpu.CompilerParams(**cp_kwargs),
    )(x3, w1t, w2m, w_sa_flat)

    return out3.reshape(n, c, h, w)


# ---------------------------------------------------------------------------
# Pure-JAX reference (mirrors the PyTorch module)
# ---------------------------------------------------------------------------
def cbam_ref(x, w_fc1, w_fc2, w_sa):
    avg = jnp.mean(x, axis=(2, 3))
    mx = jnp.max(x, axis=(2, 3))

    def mlp(p):
        hidden = jnp.maximum(p @ w_fc1.T, 0.0)
        return hidden @ w_fc2.T

    ca = jax.nn.sigmoid(mlp(avg) + mlp(mx))[:, :, None, None]
    xs = x * ca
    avg_s = jnp.mean(xs, axis=1, keepdims=True)
    max_s = jnp.max(xs, axis=1, keepdims=True)
    maps = jnp.concatenate([avg_s, max_s], axis=1)
    pad = w_sa.shape[-1] // 2
    sa = jax.lax.conv_general_dilated(
        maps, w_sa, window_strides=(1, 1), padding=((pad, pad), (pad, pad)),
        dimension_numbers=("NCHW", "OIHW", "NCHW"))
    return xs * jax.nn.sigmoid(sa)


if __name__ == "__main__":
    key = jax.random.PRNGKey(0)
    kx_, kw1, kw2, kws = jax.random.split(key, 4)

    # channels must be >= ratio for the module's C // ratio bottleneck.
    n, c, h, w = 2, 16, 16, 16
    ratio, ksize = 8, 7
    c_r = c // ratio

    x = jax.random.normal(kx_, (n, c, h, w), dtype=jnp.float32)
    w_fc1 = jax.random.normal(kw1, (c_r, c), dtype=jnp.float32) * 0.3
    w_fc2 = jax.random.normal(kw2, (c, c_r), dtype=jnp.float32) * 0.3
    w_sa = jax.random.normal(kws, (1, 2, ksize, ksize), dtype=jnp.float32) * 0.2

    fwd = jax.jit(cbam_forward)
    y = jax.block_until_ready(fwd(x, w_fc1, w_fc2, w_sa))
    y_ref = cbam_ref(x, w_fc1, w_fc2, w_sa)

    assert y.shape == x.shape and y.dtype == x.dtype
    err = float(jnp.max(jnp.abs(y - y_ref)))
    assert jnp.allclose(y, y_ref, atol=1e-5, rtol=1e-5), err
    print("KERNEL_OK")
</pallas_src>

<mosaic_0001>
module attributes {stable_mosaic.version = 11 : i64} {
  func.func @_cbam_fused_kernel(%arg0: i32, %arg1: memref<2x16x256xf32, #tpu.memory_space<vmem>>, %arg2: memref<16x2xf32, #tpu.memory_space<vmem>>, %arg3: memref<16x2xf32, #tpu.memory_space<vmem>>, %arg4: memref<98xf32, #tpu.memory_space<smem>>, %arg5: memref<2x16x256xf32, #tpu.memory_space<vmem>>, %arg6: memref<2x1x358xf32, #tpu.memory_space<vmem>>, %arg7: memref<2x1x358xf32, #tpu.memory_space<vmem>>) attributes {dimension_semantics = [#tpu.dimension_semantics<parallel>], iteration_bounds = array<i64: 1>, scalar_prefetch = 0 : i64, scratch_operands = 2 : i64, tpu.core_type = #tpu.core_type<tc>, window_params = [{transform_indices = @transform_0, window_bounds = array<i64: 2, 16, 256>}, {pipeline_mode = #tpu.pipeline_mode<synchronous>, transform_indices = @transform_1, window_bounds = array<i64: 16, 2>}, {pipeline_mode = #tpu.pipeline_mode<synchronous>, transform_indices = @transform_2, window_bounds = array<i64: 16, 2>}, {transform_indices = @transform_3, window_bounds = array<i64: 98>}, {transform_indices = @transform_4, window_bounds = array<i64: 2, 16, 256>}]} {
    %c0 = arith.constant 0 : index
    %c0_0 = arith.constant 0 : index
    %c0_1 = arith.constant 0 : index
    %0 = vector.load %arg1[%c0, %c0_0, %c0_1] : memref<2x16x256xf32, #tpu.memory_space<vmem>>, vector<2x16x256xf32>
    %cst = arith.constant dense<0.000000e+00> : vector<2x16xf32>
    %1 = vector.multi_reduction <add>, %0, %cst [2] : vector<2x16x256xf32> to vector<2x16xf32>
    %2 = vector.shape_cast %1 : vector<2x16xf32> to vector<2x16x1xf32>
    %cst_2 = arith.constant 3.906250e-03 : f32
    %3 = vector.broadcast %cst_2 : f32 to vector<2x16x1xf32>
    %4 = arith.mulf %2, %3 : vector<2x16x1xf32>
    %cst_3 = arith.constant dense<0xFF800000> : vector<2x16xf32>
    %5 = vector.multi_reduction <maximumf>, %0, %cst_3 [2] : vector<2x16x256xf32> to vector<2x16xf32>
    %6 = vector.shape_cast %5 : vector<2x16xf32> to vector<2x16x1xf32>
    %c0_4 = arith.constant 0 : index
    %c0_5 = arith.constant 0 : index
    %7 = vector.load %arg2[%c0_4, %c0_5] : memref<16x2xf32, #tpu.memory_space<vmem>>, vector<16x2xf32>
    %c0_6 = arith.constant 0 : index
    %c0_7 = arith.constant 0 : index
    %8 = vector.load %arg3[%c0_6, %c0_7] : memref<16x2xf32, #tpu.memory_space<vmem>>, vector<16x2xf32>
    %9 = vector.shape_cast %7 : vector<16x2xf32> to vector<1x16x2xf32>
    %10 = vector.broadcast %4 : vector<2x16x1xf32> to vector<2x16x2xf32>
    %11 = vector.broadcast %9 : vector<1x16x2xf32> to vector<2x16x2xf32>
    %12 = arith.mulf %10, %11 : vector<2x16x2xf32>
    %cst_8 = arith.constant dense<0.000000e+00> : vector<2x2xf32>
    %13 = vector.multi_reduction <add>, %12, %cst_8 [1] : vector<2x16x2xf32> to vector<2x2xf32>
    %14 = vector.shape_cast %13 : vector<2x2xf32> to vector<2x1x2xf32>
    %cst_9 = arith.constant 0.000000e+00 : f32
    %15 = vector.broadcast %cst_9 : f32 to vector<2x1x2xf32>
    %16 = arith.maximumf %14, %15 : vector<2x1x2xf32>
    %17 = vector.shape_cast %7 : vector<16x2xf32> to vector<1x16x2xf32>
    %18 = vector.broadcast %6 : vector<2x16x1xf32> to vector<2x16x2xf32>
    %19 = vector.broadcast %17 : vector<1x16x2xf32> to vector<2x16x2xf32>
    %20 = arith.mulf %18, %19 : vector<2x16x2xf32>
    %cst_10 = arith.constant dense<0.000000e+00> : vector<2x2xf32>
    %21 = vector.multi_reduction <add>, %20, %cst_10 [1] : vector<2x16x2xf32> to vector<2x2xf32>
    %22 = vector.shape_cast %21 : vector<2x2xf32> to vector<2x1x2xf32>
    %cst_11 = arith.constant 0.000000e+00 : f32
    %23 = vector.broadcast %cst_11 : f32 to vector<2x1x2xf32>
    %24 = arith.maximumf %22, %23 : vector<2x1x2xf32>
    %25 = arith.addf %16, %24 : vector<2x1x2xf32>
    %26 = vector.shape_cast %8 : vector<16x2xf32> to vector<1x16x2xf32>
    %27 = vector.broadcast %26 : vector<1x16x2xf32> to vector<2x16x2xf32>
    %28 = vector.broadcast %25 : vector<2x1x2xf32> to vector<2x16x2xf32>
    %29 = arith.mulf %27, %28 : vector<2x16x2xf32>
    %cst_12 = arith.constant dense<0.000000e+00> : vector<2x16xf32>
    %30 = vector.multi_reduction <add>, %29, %cst_12 [2] : vector<2x16x2xf32> to vector<2x16xf32>
    %31 = vector.shape_cast %30 : vector<2x16xf32> to vector<2x16x1xf32>
    %cst_13 = arith.constant 0.000000e+00 : f32
    %32 = vector.broadcast %cst_13 : f32 to vector<2x16x1xf32>
    %33 = arith.subf %32, %31 : vector<2x16x1xf32>
    %34 = math.exp %33 : vector<2x16x1xf32>
    %cst_14 = arith.constant 1.000000e+00 : f32
    %35 = vector.broadcast %cst_14 : f32 to vector<2x16x1xf32>
    %36 = arith.addf %35, %34 : vector<2x16x1xf32>
    %cst_15 = arith.constant 1.000000e+00 : f32
    %37 = vector.broadcast %cst_15 : f32 to vector<2x16x1xf32>
    %38 = arith.divf %37, %36 : vector<2x16x1xf32>
    %39 = vector.broadcast %38 : vector<2x16x1xf32> to vector<2x16x256xf32>
    %40 = arith.mulf %0, %39 : vector<2x16x256xf32>
    %cst_16 = arith.constant dense<0.000000e+00> : vector<2x256xf32>
    %41 = vector.multi_reduction <add>, %40, %cst_16 [1] : vector<2x16x256xf32> to vector<2x256xf32>
    %42 = vector.shape_cast %41 : vector<2x256xf32> to vector<2x1x256xf32>
    %cst_17 = arith.constant 6.250000e-02 : f32
    %43 = vector.broadcast %cst_17 : f32 to vector<2x1x256xf32>
    %44 = arith.mulf %42, %43 : vector<2x1x256xf32>
    %cst_18 = arith.constant dense<0xFF800000> : vector<2x256xf32>
    %45 = vector.multi_reduction <maximumf>, %40, %cst_18 [1] : vector<2x16x256xf32> to vector<2x256xf32>
    %46 = vector.shape_cast %45 : vector<2x256xf32> to vector<2x1x256xf32>
    %cst_19 = arith.constant 0.000000e+00 : f32
    %47 = vector.broadcast %cst_19 : f32 to vector<2x1x358xf32>
    %c0_20 = arith.constant 0 : index
    %c0_21 = arith.constant 0 : index
    %c0_22 = arith.constant 0 : index
    %48 = vector.load %arg6[%c0_20, %c0_21, %c0_22] : memref<2x1x358xf32, #tpu.memory_space<vmem>>, vector<2x1x358xf32>
    tpu.vector_store %arg6[%c0_20, %c0_21, %c0_22], %47 {strides = array<i32>} : memref<2x1x358xf32, #tpu.memory_space<vmem>>, vector<2x1x358xf32>,
    %cst_23 = arith.constant 0.000000e+00 : f32
    %49 = vector.broadcast %cst_23 : f32 to vector<2x1x358xf32>
    %c0_24 = arith.constant 0 : index
    %c0_25 = arith.constant 0 : index
    %c0_26 = arith.constant 0 : index
    %50 = vector.load %arg7[%c0_24, %c0_25, %c0_26] : memref<2x1x358xf32, #tpu.memory_space<vmem>>, vector<2x1x358xf32>
    tpu.vector_store %arg7[%c0_24, %c0_25, %c0_26], %49 {strides = array<i32>} : memref<2x1x358xf32, #tpu.memory_space<vmem>>, vector<2x1x358xf32>,
    %c0_27 = arith.constant 0 : index
    %c0_28 = arith.constant 0 : index
    %c51 = arith.constant 51 : index
    %51 = vector.load %arg6[%c0_27, %c0_28, %c51] : memref<2x1x358xf32, #tpu.memory_space<vmem>>, vector<2x1x256xf32>
    tpu.vector_store %arg6[%c0_27, %c0_28, %c51], %44 {strides = array<i32>} : memref<2x1x358xf32, #tpu.memory_space<vmem>>, vector<2x1x256xf32>,
    %c0_29 = arith.constant 0 : index
    %c0_30 = arith.constant 0 : index
    %c51_31 = arith.constant 51 : index
    %52 = vector.load %arg7[%c0_29, %c0_30, %c51_31] : memref<2x1x358xf32, #tpu.memory_space<vmem>>, vector<2x1x256xf32>
    tpu.vector_store %arg7[%c0_29, %c0_30, %c51_31], %46 {strides = array<i32>} : memref<2x1x358xf32, #tpu.memory_space<vmem>>, vector<2x1x256xf32>,
    %53 = tpu.iota {dimensions = array<i32: 2>} : vector<1x1x256xi32>
    %c16_i32 = arith.constant 16 : i32
    %c0_i32 = arith.constant 0 : i32
    %54 = arith.cmpi eq, %c16_i32, %c0_i32 : i32
    %c1_i32 = arith.constant 1 : i32
    %55 = arith.select %54, %c1_i32, %c16_i32 : i32
    %56 = vector.broadcast %55 : i32 to vector<1x1x256xi32>
    %57 = arith.remsi %53, %56 : vector<1x1x256xi32>
    %c0_i32_32 = arith.constant 0 : i32
    %58 = vector.broadcast %c0_i32_32 : i32 to vector<1x1x256xi32>
    %59 = arith.cmpi ne, %57, %58 : vector<1x1x256xi32>
    %c0_i32_33 = arith.constant 0 : i32
    %60 = vector.broadcast %c0_i32_33 : i32 to vector<1x1x256xi32>
    %61 = arith.cmpi slt, %57, %60 : vector<1x1x256xi32>
    %c0_i32_34 = arith.constant 0 : i32
    %62 = arith.cmpi slt, %55, %c0_i32_34 : i32
    %63 = vector.broadcast %62 : i1 to vector<1x1x256xi1>
    %64 = vector.broadcast %63 : vector<1x1x256xi1> to vector<1x1x256xi1>
    %65 = arith.xori %61, %64 : vector<1x1x256xi1>
    %66 = arith.andi %65, %59 : vector<1x1x256xi1>
    %67 = vector.broadcast %55 : i32 to vector<1x1x256xi32>
    %68 = arith.addi %57, %67 : vector<1x1x256xi32>
    %69 = arith.select %66, %68, %57 : vector<1x1x256xi1>, vector<1x1x256xi32>
    %cst_35 = arith.constant 0.000000e+00 : f32
    %70 = vector.broadcast %cst_35 : f32 to vector<2x1x256xf32>
    %c3_i32 = arith.constant 3 : i32
    %71 = vector.broadcast %c3_i32 : i32 to vector<1x1x256xi32>
    %72 = arith.cmpi sge, %69, %71 : vector<1x1x256xi32>
    %c19_i32 = arith.constant 19 : i32
    %73 = vector.broadcast %c19_i32 : i32 to vector<1x1x256xi32>
    %74 = arith.cmpi slt, %69, %73 : vector<1x1x256xi32>
    %75 = arith.andi %72, %74 : vector<1x1x256xi1>
    %cst_36 = arith.constant 0.000000e+00 : f32
    %76 = vector.broadcast %cst_36 : f32 to vector<2x1x256xf32>
    %c0_37 = arith.constant 0 : index
    %77 = memref.load %arg4[%c0_37] : memref<98xf32, #tpu.memory_space<smem>>
    %c49 = arith.constant 49 : index
    %78 = memref.load %arg4[%c49] : memref<98xf32, #tpu.memory_space<smem>>
    %c0_38 = arith.constant 0 : index
    %c0_39 = arith.constant 0 : index
    %c0_40 = arith.constant 0 : index
    %79 = vector.load %arg6[%c0_38, %c0_39, %c0_40] : memref<2x1x358xf32, #tpu.memory_space<vmem>>, vector<2x1x256xf32>
    %80 = vector.broadcast %77 : f32 to vector<2x1x256xf32>
    %81 = arith.mulf %80, %79 : vector<2x1x256xf32>
    %c0_41 = arith.constant 0 : index
    %c0_42 = arith.constant 0 : index
    %c0_43 = arith.constant 0 : index
    %82 = vector.load %arg7[%c0_41, %c0_42, %c0_43] : memref<2x1x358xf32, #tpu.memory_space<vmem>>, vector<2x1x256xf32>
    %83 = vector.broadcast %78 : f32 to vector<2x1x256xf32>
    %84 = arith.mulf %83, %82 : vector<2x1x256xf32>
    %85 = arith.addf %81, %84 : vector<2x1x256xf32>
    %86 = arith.addf %76, %85 : vector<2x1x256xf32>
    %c7 = arith.constant 7 : index
    %87 = memref.load %arg4[%c7] : memref<98xf32, #tpu.memory_space<smem>>
    %c56 = arith.constant 56 : index
    %88 = memref.load %arg4[%c56] : memref<98xf32, #tpu.memory_space<smem>>
    %c0_44 = arith.constant 0 : index
    %c0_45 = arith.constant 0 : index
    %c16 = arith.constant 16 : index
    %89 = vector.load %arg6[%c0_44, %c0_45, %c16] : memref<2x1x358xf32, #tpu.memory_space<vmem>>, vector<2x1x256xf32>
    %90 = vector.broadcast %87 : f32 to vector<2x1x256xf32>
    %91 = arith.mulf %90, %89 : vector<2x1x256xf32>
    %c0_46 = arith.constant 0 : index
    %c0_47 = arith.constant 0 : index
    %c16_48 = arith.constant 16 : index
    %92 = vector.load %arg7[%c0_46, %c0_47, %c16_48] : memref<2x1x358xf32, #tpu.memory_space<vmem>>, vector<2x1x256xf32>
    %93 = vector.broadcast %88 : f32 to vector<2x1x256xf32>
    %94 = arith.mulf %93, %92 : vector<2x1x256xf32>
    %95 = arith.addf %91, %94 : vector<2x1x256xf32>
    %96 = arith.addf %86, %95 : vector<2x1x256xf32>
    %c14 = arith.constant 14 : index
    %97 = memref.load %arg4[%c14] : memref<98xf32, #tpu.memory_space<smem>>
    %c63 = arith.constant 63 : index
    %98 = memref.load %arg4[%c63] : memref<98xf32, #tpu.memory_space<smem>>
    %c0_49 = arith.constant 0 : index
    %c0_50 = arith.constant 0 : index
    %c32 = arith.constant 32 : index
    %99 = vector.load %arg6[%c0_49, %c0_50, %c32] : memref<2x1x358xf32, #tpu.memory_space<vmem>>, vector<2x1x256xf32>
    %100 = vector.broadcast %97 : f32 to vector<2x1x256xf32>
    %101 = arith.mulf %100, %99 : vector<2x1x256xf32>
    %c0_51 = arith.constant 0 : index
    %c0_52 = arith.constant 0 : index
    %c32_53 = arith.constant 32 : index
    %102 = vector.load %arg7[%c0_51, %c0_52, %c32_53] : memref<2x1x358xf32, #tpu.memory_space<vmem>>, vector<2x1x256xf32>
    %103 = vector.broadcast %98 : f32 to vector<2x1x256xf32>
    %104 = arith.mulf %103, %102 : vector<2x1x256xf32>
    %105 = arith.addf %101, %104 : vector<2x1x256xf32>
    %106 = arith.addf %96, %105 : vector<2x1x256xf32>
    %c21 = arith.constant 21 : index
    %107 = memref.load %arg4[%c21] : memref<98xf32, #tpu.memory_space<smem>>
    %c70 = arith.constant 70 : index
    %108 = memref.load %arg4[%c70] : memref<98xf32, #tpu.memory_space<smem>>
    %c0_54 = arith.constant 0 : index
    %c0_55 = arith.constant 0 : index
    %c48 = arith.constant 48 : index
    %109 = vector.load %arg6[%c0_54, %c0_55, %c48] : memref<2x1x358xf32, #tpu.memory_space<vmem>>, vector<2x1x256xf32>
    %110 = vector.broadcast %107 : f32 to vector<2x1x256xf32>
    %111 = arith.mulf %110, %109 : vector<2x1x256xf32>
    %c0_56 = arith.constant 0 : index
    %c0_57 = arith.constant 0 : index
    %c48_58 = arith.constant 48 : index
    %112 = vector.load %arg7[%c0_56, %c0_57, %c48_58] : memref<2x1x358xf32, #tpu.memory_space<vmem>>, vector<2x1x256xf32>
    %113 = vector.broadcast %108 : f32 to vector<2x1x256xf32>
    %114 = arith.mulf %113, %112 : vector<2x1x256xf32>
    %115 = arith.addf %111, %114 : vector<2x1x256xf32>
    %116 = arith.addf %106, %115 : vector<2x1x256xf32>
    %c28 = arith.constant 28 : index
    %117 = memref.load %arg4[%c28] : memref<98xf32, #tpu.memory_space<smem>>
    %c77 = arith.constant 77 : index
    %118 = memref.load %arg4[%c77] : memref<98xf32, #tpu.memory_space<smem>>
    %c0_59 = arith.constant 0 : index
    %c0_60 = arith.constant 0 : index
    %c64 = arith.constant 64 : index
    %119 = vector.load %arg6[%c0_59, %c0_60, %c64] : memref<2x1x358xf32, #tpu.memory_space<vmem>>, vector<2x1x256xf32>
    %120 = vector.broadcast %117 : f32 to vector<2x1x256xf32>
    %121 = arith.mulf %120, %119 : vector<2x1x256xf32>
    %c0_61 = arith.constant 0 : index
    %c0_62 = arith.constant 0 : index
    %c64_63 = arith.constant 64 : index
    %122 = vector.load %arg7[%c0_61, %c0_62, %c64_63] : memref<2x1x358xf32, #tpu.memory_space<vmem>>, vector<2x1x256xf32>
    %123 = vector.broadcast %118 : f32 to vector<2x1x256xf32>
    %124 = arith.mulf %123, %122 : vector<2x1x256xf32>
    %125 = arith.addf %121, %124 : vector<2x1x256xf32>
    %126 = arith.addf %116, %125 : vector<2x1x256xf32>
    %c35 = arith.constant 35 : index
    %127 = memref.load %arg4[%c35] : memref<98xf32, #tpu.memory_space<smem>>
    %c84 = arith.constant 84 : index
    %128 = memref.load %arg4[%c84] : memref<98xf32, #tpu.memory_space<smem>>
    %c0_64 = arith.constant 0 : index
    %c0_65 = arith.constant 0 : index
    %c80 = arith.constant 80 : index
    %129 = vector.load %arg6[%c0_64, %c0_65, %c80] : memref<2x1x358xf32, #tpu.memory_space<vmem>>, vector<2x1x256xf32>
    %130 = vector.broadcast %127 : f32 to vector<2x1x256xf32>
    %131 = arith.mulf %130, %129 : vector<2x1x256xf32>
    %c0_66 = arith.constant 0 : index
    %c0_67 = arith.constant 0 : index
    %c80_68 = arith.constant 80 : index
    %132 = vector.load %arg7[%c0_66, %c0_67, %c80_68] : memref<2x1x358xf32, #tpu.memory_space<vmem>>, vector<2x1x256xf32>
    %133 = vector.broadcast %128 : f32 to vector<2x1x256xf32>
    %134 = arith.mulf %133, %132 : vector<2x1x256xf32>
    %135 = arith.addf %131, %134 : vector<2x1x256xf32>
    %136 = arith.addf %126, %135 : vector<2x1x256xf32>
    %c42 = arith.constant 42 : index
    %137 = memref.load %arg4[%c42] : memref<98xf32, #tpu.memory_space<smem>>
    %c91 = arith.constant 91 : index
    %138 = memref.load %arg4[%c91] : memref<98xf32, #tpu.memory_space<smem>>
    %c0_69 = arith.constant 0 : index
    %c0_70 = arith.constant 0 : index
    %c96 = arith.constant 96 : index
    %139 = vector.load %arg6[%c0_69, %c0_70, %c96] : memref<2x1x358xf32, #tpu.memory_space<vmem>>, vector<2x1x256xf32>
    %140 = vector.broadcast %137 : f32 to vector<2x1x256xf32>
    %141 = arith.mulf %140, %139 : vector<2x1x256xf32>
    %c0_71 = arith.constant 0 : index
    %c0_72 = arith.constant 0 : index
    %c96_73 = arith.constant 96 : index
    %142 = vector.load %arg7[%c0_71, %c0_72, %c96_73] : memref<2x1x358xf32, #tpu.memory_space<vmem>>, vector<2x1x256xf32>
    %143 = vector.broadcast %138 : f32 to vector<2x1x256xf32>
    %144 = arith.mulf %143, %142 : vector<2x1x256xf32>
    %145 = arith.addf %141, %144 : vector<2x1x256xf32>
    %146 = arith.addf %136, %145 : vector<2x1x256xf32>
    %cst_74 = arith.constant 0.000000e+00 : f32
    %147 = vector.shape_cast %75 : vector<1x1x256xi1> to vector<1x1x256xi1>
    %148 = vector.broadcast %147 : vector<1x1x256xi1> to vector<2x1x256xi1>
    %149 = vector.broadcast %cst_74 : f32 to vector<2x1x256xf32>
    %150 = arith.select %148, %146, %149 : vector<2x1x256xi1>, vector<2x1x256xf32>
    %151 = arith.addf %70, %150 : vector<2x1x256xf32>
    %c2_i32 = arith.constant 2 : i32
    %152 = vector.broadcast %c2_i32 : i32 to vector<1x1x256xi32>
    %153 = arith.cmpi sge, %69, %152 : vector<1x1x256xi32>
    %c18_i32 = arith.constant 18 : i32
    %154 = vector.broadcast %c18_i32 : i32 to vector<1x1x256xi32>
    %155 = arith.cmpi slt, %69, %154 : vector<1x1x256xi32>
    %156 = arith.andi %153, %155 : vector<1x1x256xi1>
    %cst_75 = arith.constant 0.000000e+00 : f32
    %157 = vector.broadcast %cst_75 : f32 to vector<2x1x256xf32>
    %c1 = arith.constant 1 : index
    %158 = memref.load %arg4[%c1] : memref<98xf32, #tpu.memory_space<smem>>
    %c50 = arith.constant 50 : index
    %159 = memref.load %arg4[%c50] : memref<98xf32, #tpu.memory_space<smem>>
    %c0_76 = arith.constant 0 : index
    %c0_77 = arith.constant 0 : index
    %c1_78 = arith.constant 1 : index
    %160 = vector.load %arg6[%c0_76, %c0_77, %c1_78] : memref<2x1x358xf32, #tpu.memory_space<vmem>>, vector<2x1x256xf32>
    %161 = vector.broadcast %158 : f32 to vector<2x1x256xf32>
    %162 = arith.mulf %161, %160 : vector<2x1x256xf32>
    %c0_79 = arith.constant 0 : index
    %c0_80 = arith.constant 0 : index
    %c1_81 = arith.constant 1 : index
    %163 = vector.load %arg7[%c0_79, %c0_80, %c1_81] : memref<2x1x358xf32, #tpu.memory_space<vmem>>, vector<2x1x256xf32>
    %164 = vector.broadcast %159 : f32 to vector<2x1x256xf32>
    %165 = arith.mulf %164, %163 : vector<2x1x256xf32>
    %166 = arith.addf %162, %165 : vector<2x1x256xf32>
    %167 = arith.addf %157, %166 : vector<2x1x256xf32>
    %c8 = arith.constant 8 : index
    %168 = memref.load %arg4[%c8] : memref<98xf32, #tpu.memory_space<smem>>
    %c57 = arith.constant 57 : index
    %169 = memref.load %arg4[%c57] : memref<98xf32, #tpu.memory_space<smem>>
    %c0_82 = arith.constant 0 : index
    %c0_83 = arith.constant 0 : index
    %c17 = arith.constant 17 : index
    %170 = vector.load %arg6[%c0_82, %c0_83, %c17] : memref<2x1x358xf32, #tpu.memory_space<vmem>>, vector<2x1x256xf32>
    %171 = vector.broadcast %168 : f32 to vector<2x1x256xf32>
    %172 = arith.mulf %171, %170 : vector<2x1x256xf32>
    %c0_84 = arith.constant 0 : index
    %c0_85 = arith.constant 0 : index
    %c17_86 = arith.constant 17 : index
    %173 = vector.load %arg7[%c0_84, %c0_85, %c17_86] : memref<2x1x358xf32, #tpu.memory_space<vmem>>, vector<2x1x256xf32>
    %174 = vector.broadcast %169 : f32 to vector<2x1x256xf32>
    %175 = arith.mulf %174, %173 : vector<2x1x256xf32>
    %176 = arith.addf %172, %175 : vector<2x1x256xf32>
    %177 = arith.addf %167, %176 : vector<2x1x256xf32>
    %c15 = arith.constant 15 : index
    %178 = memref.load %arg4[%c15] : memref<98xf32, #tpu.memory_space<smem>>
    %c64_87 = arith.constant 64 : index
    %179 = memref.load %arg4[%c64_87] : memref<98xf32, #tpu.memory_space<smem>>
    %c0_88 = arith.constant 0 : index
    %c0_89 = arith.constant 0 : index
    %c33 = arith.constant 33 : index
    %180 = vector.load %arg6[%c0_88, %c0_89, %c33] : memref<2x1x358xf32, #tpu.memory_space<vmem>>, vector<2x1x256xf32>
    %181 = vector.broadcast %178 : f32 to vector<2x1x256xf32>
    %182 = arith.mulf %181, %180 : vector<2x1x256xf32>
    %c0_90 = arith.constant 0 : index
    %c0_91 = arith.constant 0 : index
    %c33_92 = arith.constant 33 : index
    %183 = vector.load %arg7[%c0_90, %c0_91, %c33_92] : memref<2x1x358xf32, #tpu.memory_space<vmem>>, vector<2x1x256xf32>
    %184 = vector.broadcast %179 : f32 to vector<2x1x256xf32>
    %185 = arith.mulf %184, %183 : vector<2x1x256xf32>
    %186 = arith.addf %182, %185 : vector<2x1x256xf32>
    %187 = arith.addf %177, %186 : vector<2x1x256xf32>
    %c22 = arith.constant 22 : index
    %188 = memref.load %arg4[%c22] : memref<98xf32, #tpu.memory_space<smem>>
    %c71 = arith.constant 71 : index
    %189 = memref.load %arg4[%c71] : memref<98xf32, #tpu.memory_space<smem>>
    %c0_93 = arith.constant 0 : index
    %c0_94 = arith.constant 0 : index
    %c49_95 = arith.constant 49 : index
    %190 = vector.load %arg6[%c0_93, %c0_94, %c49_95] : memref<2x1x358xf32, #tpu.memory_space<vmem>>, vector<2x1x256xf32>
    %191 = vector.broadcast %188 : f32 to vector<2x1x256xf32>
    %192 = arith.mulf %191, %190 : vector<2x1x256xf32>
    %c0_96 = arith.constant 0 : index
    %c0_97 = arith.constant 0 : index
    %c49_98 = arith.constant 49 : index
    %193 = vector.load %arg7[%c0_96, %c0_97, %c49_98] : memref<2x1x358xf32, #tpu.memory_space<vmem>>, vector<2x1x256xf32>
    %194 = vector.broadcast %189 : f32 to vector<2x1x256xf32>
    %195 = arith.mulf %194, %193 : vector<2x1x256xf32>
    %196 = arith.addf %192, %195 : vector<2x1x256xf32>
    %197 = arith.addf %187, %196 : vector<2x1x256xf32>
    %c29 = arith.constant 29 : index
    %198 = memref.load %arg4[%c29] : memref<98xf32, #tpu.memory_space<smem>>
    %c78 = arith.constant 78 : index
    %199 = memref.load %arg4[%c78] : memref<98xf32, #tpu.memory_space<smem>>
    %c0_99 = arith.constant 0 : index
    %c0_100 = arith.constant 0 : index
    %c65 = arith.constant 65 : index
    %200 = vector.load %arg6[%c0_99, %c0_100, %c65] : memref<2x1x358xf32, #tpu.memory_space<vmem>>, vector<2x1x256xf32>
    %201 = vector.broadcast %198 : f32 to vector<2x1x256xf32>
    %202 = arith.mulf %201, %200 : vector<2x1x256xf32>
    %c0_101 = arith.constant 0 : index
    %c0_102 = arith.constant 0 : index
    %c65_103 = arith.constant 65 : index
    %203 = vector.load %arg7[%c0_101, %c0_102, %c65_103] : memref<2x1x358xf32, #tpu.memory_space<vmem>>, vector<2x1x256xf32>
    %204 = vector.broadcast %199 : f32 to vector<2x1x256xf32>
    %205 = arith.mulf %204, %203 : vector<2x1x256xf32>
    %206 = arith.addf %202, %205 : vector<2x1x256xf32>
    %207 = arith.addf %197, %206 : vector<2x1x256xf32>
    %c36 = arith.constant 36 : index
    %208 = memref.load %arg4[%c36] : memref<98xf32, #tpu.memory_space<smem>>
    %c85 = arith.constant 85 : index
    %209 = memref.load %arg4[%c85] : memref<98xf32, #tpu.memory_space<smem>>
    %c0_104 = arith.constant 0 : index
    %c0_105 = arith.constant 0 : index
    %c81 = arith.constant 81 : index
    %210 = vector.load %arg6[%c0_104, %c0_105, %c81] : memref<2x1x358xf32, #tpu.memory_space<vmem>>, vector<2x1x256xf32>
    %211 = vector.broadcast %208 : f32 to vector<2x1x256xf32>
    %212 = arith.mulf %211, %210 : vector<2x1x256xf32>
    %c0_106 = arith.constant 0 : index
    %c0_107 = arith.constant 0 : index
    %c81_108 = arith.constant 81 : index
    %213 = vector.load %arg7[%c0_106, %c0_107, %c81_108] : memref<2x1x358xf32, #tpu.memory_space<vmem>>, vector<2x1x256xf32>
    %214 = vector.broadcast %209 : f32 to vector<2x1x256xf32>
    %215 = arith.mulf %214, %213 : vector<2x1x256xf32>
    %216 = arith.addf %212, %215 : vector<2x1x256xf32>
    %217 = arith.addf %207, %216 : vector<2x1x256xf32>
    %c43 = arith.constant 43 : index
    %218 = memref.load %arg4[%c43] : memref<98xf32, #tpu.memory_space<smem>>
    %c92 = arith.constant 92 : index
    %219 = memref.load %arg4[%c92] : memref<98xf32, #tpu.memory_space<smem>>
    %c0_109 = arith.constant 0 : index
    %c0_110 = arith.constant 0 : index
    %c97 = arith.constant 97 : index
    %220 = vector.load %arg6[%c0_109, %c0_110, %c97] : memref<2x1x358xf32, #tpu.memory_space<vmem>>, vector<2x1x256xf32>
    %221 = vector.broadcast %218 : f32 to vector<2x1x256xf32>
    %222 = arith.mulf %221, %220 : vector<2x1x256xf32>
    %c0_111 = arith.constant 0 : index
    %c0_112 = arith.constant 0 : index
    %c97_113 = arith.constant 97 : index
    %223 = vector.load %arg7[%c0_111, %c0_112, %c97_113] : memref<2x1x358xf32, #tpu.memory_space<vmem>>, vector<2x1x256xf32>
    %224 = vector.broadcast %219 : f32 to vector<2x1x256xf32>
    %225 = arith.mulf %224, %223 : vector<2x1x256xf32>
    %226 = arith.addf %222, %225 : vector<2x1x256xf32>
    %227 = arith.addf %217, %226 : vector<2x1x256xf32>
    %cst_114 = arith.constant 0.000000e+00 : f32
    %228 = vector.shape_cast %156 : vector<1x1x256xi1> to vector<1x1x256xi1>
    %229 = vector.broadcast %228 : vector<1x1x256xi1> to vector<2x1x256xi1>
    %230 = vector.broadcast %cst_114 : f32 to vector<2x1x256xf32>
    %231 = arith.select %229, %227, %230 : vector<2x1x256xi1>, vector<2x1x256xf32>
    %232 = arith.addf %151, %231 : vector<2x1x256xf32>
    %c1_i32_115 = arith.constant 1 : i32
    %233 = vector.broadcast %c1_i32_115 : i32 to vector<1x1x256xi32>
    %234 = arith.cmpi sge, %69, %233 : vector<1x1x256xi32>
    %c17_i32 = arith.constant 17 : i32
    %235 = vector.broadcast %c17_i32 : i32 to vector<1x1x256xi32>
    %236 = arith.cmpi slt, %69, %235 : vector<1x1x256xi32>
    %237 = arith.andi %234, %236 : vector<1x1x256xi1>
    %cst_116 = arith.constant 0.000000e+00 : f32
    %238 = vector.broadcast %cst_116 : f32 to vector<2x1x256xf32>
    %c2 = arith.constant 2 : index
    %239 = memref.load %arg4[%c2] : memref<98xf32, #tpu.memory_space<smem>>
    %c51_117 = arith.constant 51 : index
    %240 = memref.load %arg4[%c51_117] : memref<98xf32, #tpu.memory_space<smem>>
    %c0_118 = arith.constant 0 : index
    %c0_119 = arith.constant 0 : index
    %c2_120 = arith.constant 2 : index
    %241 = vector.load %arg6[%c0_118, %c0_119, %c2_120] : memref<2x1x358xf32, #tpu.memory_space<vmem>>, vector<2x1x256xf32>
    %242 = vector.broadcast %239 : f32 to vector<2x1x256xf32>
    %243 = arith.mulf %242, %241 : vector<2x1x256xf32>
    %c0_121 = arith.constant 0 : index
    %c0_122 = arith.constant 0 : index
    %c2_123 = arith.constant 2 : index
    %244 = vector.load %arg7[%c0_121, %c0_122, %c2_123] : memref<2x1x358xf32, #tpu.memory_space<vmem>>, vector<2x1x256xf32>
    %245 = vector.broadcast %240 : f32 to vector<2x1x256xf32>
    %246 = arith.mulf %245, %244 : vector<2x1x256xf32>
    %247 = arith.addf %243, %246 : vector<2x1x256xf32>
    %248 = arith.addf %238, %247 : vector<2x1x256xf32>
    %c9 = arith.constant 9 : index
    %249 = memref.load %arg4[%c9] : memref<98xf32, #tpu.memory_space<smem>>
    %c58 = arith.constant 58 : index
    %250 = memref.load %arg4[%c58] : memref<98xf32, #tpu.memory_space<smem>>
    %c0_124 = arith.constant 0 : index
    %c0_125 = arith.constant 0 : index
    %c18 = arith.constant 18 : index
    %251 = vector.load %arg6[%c0_124, %c0_125, %c18] : memref<2x1x358xf32, #tpu.memory_space<vmem>>, vector<2x1x256xf32>
    %252 = vector.broadcast %249 : f32 to vector<2x1x256xf32>
    %253 = arith.mulf %252, %251 : vector<2x1x256xf32>
    %c0_126 = arith.constant 0 : index
    %c0_127 = arith.constant 0 : index
    %c18_128 = arith.constant 18 : index
    %254 = vector.load %arg7[%c0_126, %c0_127, %c18_128] : memref<2x1x358xf32, #tpu.memory_space<vmem>>, vector<2x1x256xf32>
    %255 = vector.broadcast %250 : f32 to vector<2x1x256xf32>
    %256 = arith.mulf %255, %254 : vector<2x1x256xf32>
    %257 = arith.addf %253, %256 : vector<2x1x256xf32>
    %258 = arith.addf %248, %257 : vector<2x1x256xf32>
    %c16_129 = arith.constant 16 : index
    %259 = memref.load %arg4[%c16_129] : memref<98xf32, #tpu.memory_space<smem>>
    %c65_130 = arith.constant 65 : index
    %260 = memref.load %arg4[%c65_130] : memref<98xf32, #tpu.memory_space<smem>>
    %c0_131 = arith.constant 0 : index
    %c0_132 = arith.constant 0 : index
    %c34 = arith.constant 34 : index
    %261 = vector.load %arg6[%c0_131, %c0_132, %c34] : memref<2x1x358xf32, #tpu.memory_space<vmem>>, vector<2x1x256xf32>
    %262 = vector.broadcast %259 : f32 to vector<2x1x256xf32>
    %263 = arith.mulf %262, %261 : vector<2x1x256xf32>
    %c0_133 = arith.constant 0 : index
    %c0_134 = arith.constant 0 : index
    %c34_135 = arith.constant 34 : index
    %264 = vector.load %arg7[%c0_133, %c0_134, %c34_135] : memref<2x1x358xf32, #tpu.memory_space<vmem>>, vector<2x1x256xf32>
    %265 = vector.broadcast %260 : f32 to vector<2x1x256xf32>
    %266 = arith.mulf %265, %264 : vector<2x1x256xf32>
    %267 = arith.addf %263, %266 : vector<2x1x256xf32>
    %268 = arith.addf %258, %267 : vector<2x1x256xf32>
    %c23 = arith.constant 23 : index
    %269 = memref.load %arg4[%c23] : memref<98xf32, #tpu.memory_space<smem>>
    %c72 = arith.constant 72 : index
    %270 = memref.load %arg4[%c72] : memref<98xf32, #tpu.memory_space<smem>>
    %c0_136 = arith.constant 0 : index
    %c0_137 = arith.constant 0 : index
    %c50_138 = arith.constant 50 : index
    %271 = vector.load %arg6[%c0_136, %c0_137, %c50_138] : memref<2x1x358xf32, #tpu.memory_space<vmem>>, vector<2x1x256xf32>
    %272 = vector.broadcast %269 : f32 to vector<2x1x256xf32>
    %273 = arith.mulf %272, %271 : vector<2x1x256xf32>
    %c0_139 = arith.constant 0 : index
    %c0_140 = arith.constant 0 : index
    %c50_141 = arith.constant 50 : index
    %274 = vector.load %arg7[%c0_139, %c0_140, %c50_141] : memref<2x1x358xf32, #tpu.memory_space<vmem>>, vector<2x1x256xf32>
    %275 = vector.broadcast %270 : f32 to vector<2x1x256xf32>
    %276 = arith.mulf %275, %274 : vector<2x1x256xf32>
    %277 = arith.addf %273, %276 : vector<2x1x256xf32>
    %278 = arith.addf %268, %277 : vector<2x1x256xf32>
    %c30 = arith.constant 30 : index
    %279 = memref.load %arg4[%c30] : memref<98xf32, #tpu.memory_space<smem>>
    %c79 = arith.constant 79 : index
    %280 = memref.load %arg4[%c79] : memref<98xf32, #tpu.memory_space<smem>>
    %c0_142 = arith.constant 0 : index
    %c0_143 = arith.constant 0 : index
    %c66 = arith.constant 66 : index
    %281 = vector.load %arg6[%c0_142, %c0_143, %c66] : memref<2x1x358xf32, #tpu.memory_space<vmem>>, vector<2x1x256xf32>
    %282 = vector.broadcast %279 : f32 to vector<2x1x256xf32>
    %283 = arith.mulf %282, %281 : vector<2x1x256xf32>
    %c0_144 = arith.constant 0 : index
    %c0_145 = arith.constant 0 : index
    %c66_146 = arith.constant 66 : index
    %284 = vector.load %arg7[%c0_144, %c0_145, %c66_146] : memref<2x1x358xf32, #tpu.memory_space<vmem>>, vector<2x1x256xf32>
    %285 = vector.broadcast %280 : f32 to vector<2x1x256xf32>
    %286 = arith.mulf %285, %284 : vector<2x1x256xf32>
    %287 = arith.addf %283, %286 : vector<2x1x256xf32>
    %288 = arith.addf %278, %287 : vector<2x1x256xf32>
    %c37 = arith.constant 37 : index
    %289 = memref.load %arg4[%c37] : memref<98xf32, #tpu.memory_space<smem>>
    %c86 = arith.constant 86 : index
    %290 = memref.load %arg4[%c86] : memref<98xf32, #tpu.memory_space<smem>>
    %c0_147 = arith.constant 0 : index
    %c0_148 = arith.constant 0 : index
    %c82 = arith.constant 82 : index
    %291 = vector.load %arg6[%c0_147, %c0_148, %c82] : memref<2x1x358xf32, #tpu.memory_space<vmem>>, vector<2x1x256xf32>
    %292 = vector.broadcast %289 : f32 to vector<2x1x256xf32>
    %293 = arith.mulf %292, %291 : vector<2x1x256xf32>
    %c0_149 = arith.constant 0 : index
    %c0_150 = arith.constant 0 : index
    %c82_151 = arith.constant 82 : index
    %294 = vector.load %arg7[%c0_149, %c0_150, %c82_151] : memref<2x1x358xf32, #tpu.memory_space<vmem>>, vector<2x1x256xf32>
    %295 = vector.broadcast %290 : f32 to vector<2x1x256xf32>
    %296 = arith.mulf %295, %294 : vector<2x1x256xf32>
    %297 = arith.addf %293, %296 : vector<2x1x256xf32>
    %298 = arith.addf %288, %297 : vector<2x1x256xf32>
    %c44 = arith.constant 44 : index
    %299 = memref.load %arg4[%c44] : memref<98xf32, #tpu.memory_space<smem>>
    %c93 = arith.constant 93 : index
    %300 = memref.load %arg4[%c93] : memref<98xf32, #tpu.memory_space<smem>>
    %c0_152 = arith.constant 0 : index
    %c0_153 = arith.constant 0 : index
    %c98 = arith.constant 98 : index
    %301 = vector.load %arg6[%c0_152, %c0_153, %c98] : memref<2x1x358xf32, #tpu.memory_space<vmem>>, vector<2x1x256xf32>
    %302 = vector.broadcast %299 : f32 to vector<2x1x256xf32>
    %303 = arith.mulf %302, %301 : vector<2x1x256xf32>
    %c0_154 = arith.constant 0 : index
    %c0_155 = arith.constant 0 : index
    %c98_156 = arith.constant 98 : index
    %304 = vector.load %arg7[%c0_154, %c0_155, %c98_156] : memref<2x1x358xf32, #tpu.memory_space<vmem>>, vector<2x1x256xf32>
    %305 = vector.broadcast %300 : f32 to vector<2x1x256xf32>
    %306 = arith.mulf %305, %304 : vector<2x1x256xf32>
    %307 = arith.addf %303, %306 : vector<2x1x256xf32>
    %308 = arith.addf %298, %307 : vector<2x1x256xf32>
    %cst_157 = arith.constant 0.000000e+00 : f32
    %309 = vector.shape_cast %237 : vector<1x1x256xi1> to vector<1x1x256xi1>
    %310 = vector.broadcast %309 : vector<1x1x256xi1> to vector<2x1x256xi1>
    %311 = vector.broadcast %cst_157 : f32 to vector<2x1x256xf32>
    %312 = arith.select %310, %308, %311 : vector<2x1x256xi1>, vector<2x1x256xf32>
    %313 = arith.addf %232, %312 : vector<2x1x256xf32>
    %c0_i32_158 = arith.constant 0 : i32
    %314 = vector.broadcast %c0_i32_158 : i32 to vector<1x1x256xi32>
    %315 = arith.cmpi sge, %69, %314 : vector<1x1x256xi32>
    %c16_i32_159 = arith.constant 16 : i32
    %316 = vector.broadcast %c16_i32_159 : i32 to vector<1x1x256xi32>
    %317 = arith.cmpi slt, %69, %316 : vector<1x1x256xi32>
    %318 = arith.andi %315, %317 : vector<1x1x256xi1>
    %cst_160 = arith.constant 0.000000e+00 : f32
    %319 = vector.broadcast %cst_160 : f32 to vector<2x1x256xf32>
    %c3 = arith.constant 3 : index
    %320 = memref.load %arg4[%c3] : memref<98xf32, #tpu.memory_space<smem>>
    %c52 = arith.constant 52 : index
    %321 = memref.load %arg4[%c52] : memref<98xf32, #tpu.memory_space<smem>>
    %c0_161 = arith.constant 0 : index
    %c0_162 = arith.constant 0 : index
    %c3_163 = arith.constant 3 : index
    %322 = vector.load %arg6[%c0_161, %c0_162, %c3_163] : memref<2x1x358xf32, #tpu.memory_space<vmem>>, vector<2x1x256xf32>
    %323 = vector.broadcast %320 : f32 to vector<2x1x256xf32>
    %324 = arith.mulf %323, %322 : vector<2x1x256xf32>
    %c0_164 = arith.constant 0 : index
    %c0_165 = arith.constant 0 : index
    %c3_166 = arith.constant 3 : index
    %325 = vector.load %arg7[%c0_164, %c0_165, %c3_166] : memref<2x1x358xf32, #tpu.memory_space<vmem>>, vector<2x1x256xf32>
    %326 = vector.broadcast %321 : f32 to vector<2x1x256xf32>
    %327 = arith.mulf %326, %325 : vector<2x1x256xf32>
    %328 = arith.addf %324, %327 : vector<2x1x256xf32>
    %329 = arith.addf %319, %328 : vector<2x1x256xf32>
    %c10 = arith.constant 10 : index
    %330 = memref.load %arg4[%c10] : memref<98xf32, #tpu.memory_space<smem>>
    %c59 = arith.constant 59 : index
    %331 = memref.load %arg4[%c59] : memref<98xf32, #tpu.memory_space<smem>>
    %c0_167 = arith.constant 0 : index
    %c0_168 = arith.constant 0 : index
    %c19 = arith.constant 19 : index
    %332 = vector.load %arg6[%c0_167, %c0_168, %c19] : memref<2x1x358xf32, #tpu.memory_space<vmem>>, vector<2x1x256xf32>
    %333 = vector.broadcast %330 : f32 to vector<2x1x256xf32>
    %334 = arith.mulf %333, %332 : vector<2x1x256xf32>
    %c0_169 = arith.constant 0 : index
    %c0_170 = arith.constant 0 : index
    %c19_171 = arith.constant 19 : index
    %335 = vector.load %arg7[%c0_169, %c0_170, %c19_171] : memref<2x1x358xf32, #tpu.memory_space<vmem>>, vector<2x1x256xf32>
    %336 = vector.broadcast %331 : f32 to vector<2x1x256xf32>
    %337 = arith.mulf %336, %335 : vector<2x1x256xf32>
    %338 = arith.addf %334, %337 : vector<2x1x256xf32>
    %339 = arith.addf %329, %338 : vector<2x1x256xf32>
    %c17_172 = arith.constant 17 : index
    %340 = memref.load %arg4[%c17_172] : memref<98xf32, #tpu.memory_space<smem>>
    %c66_173 = arith.constant 66 : index
    %341 = memref.load %arg4[%c66_173] : memref<98xf32, #tpu.memory_space<smem>>
    %c0_174 = arith.constant 0 : index
    %c0_175 = arith.constant 0 : index
    %c35_176 = arith.constant 35 : index
    %342 = vector.load %arg6[%c0_174, %c0_175, %c35_176] : memref<2x1x358xf32, #tpu.memory_space<vmem>>, vector<2x1x256xf32>
    %343 = vector.broadcast %340 : f32 to vector<2x1x256xf32>
    %344 = arith.mulf %343, %342 : vector<2x1x256xf32>
    %c0_177 = arith.constant 0 : index
    %c0_178 = arith.constant 0 : index
    %c35_179 = arith.constant 35 : index
    %345 = vector.load %arg7[%c0_177, %c0_178, %c35_179] : memref<2x1x358xf32, #tpu.memory_space<vmem>>, vector<2x1x256xf32>
    %346 = vector.broadcast %341 : f32 to vector<2x1x256xf32>
    %347 = arith.mulf %346, %345 : vector<2x1x256xf32>
    %348 = arith.addf %344, %347 : vector<2x1x256xf32>
    %349 = arith.addf %339, %348 : vector<2x1x256xf32>
    %c24 = arith.constant 24 : index
    %350 = memref.load %arg4[%c24] : memref<98xf32, #tpu.memory_space<smem>>
    %c73 = arith.constant 73 : index
    %351 = memref.load %arg4[%c73] : memref<98xf32, #tpu.memory_space<smem>>
    %c0_180 = arith.constant 0 : index
    %c0_181 = arith.constant 0 : index
    %c51_182 = arith.constant 51 : index
    %352 = vector.load %arg6[%c0_180, %c0_181, %c51_182] : memref<2x1x358xf32, #tpu.memory_space<vmem>>, vector<2x1x256xf32>
    %353 = vector.broadcast %350 : f32 to vector<2x1x256xf32>
    %354 = arith.mulf %353, %352 : vector<2x1x256xf32>
    %c0_183 = arith.constant 0 : index
    %c0_184 = arith.constant 0 : index
    %c51_185 = arith.constant 51 : index
    %355 = vector.load %arg7[%c0_183, %c0_184, %c51_185] : memref<2x1x358xf32, #tpu.memory_space<vmem>>, vector<2x1x256xf32>
    %356 = vector.broadcast %351 : f32 to vector<2x1x256xf32>
    %357 = arith.mulf %356, %355 : vector<2x1x256xf32>
    %358 = arith.addf %354, %357 : vector<2x1x256xf32>
    %359 = arith.addf %349, %358 : vector<2x1x256xf32>
    %c31 = arith.constant 31 : index
    %360 = memref.load %arg4[%c31] : memref<98xf32, #tpu.memory_space<smem>>
    %c80_186 = arith.constant 80 : index
    %361 = memref.load %arg4[%c80_186] : memref<98xf32, #tpu.memory_space<smem>>
    %c0_187 = arith.constant 0 : index
    %c0_188 = arith.constant 0 : index
    %c67 = arith.constant 67 : index
    %362 = vector.load %arg6[%c0_187, %c0_188, %c67] : memref<2x1x358xf32, #tpu.memory_space<vmem>>, vector<2x1x256xf32>
    %363 = vector.broadcast %360 : f32 to vector<2x1x256xf32>
    %364 = arith.mulf %363, %362 : vector<2x1x256xf32>
    %c0_189 = arith.constant 0 : index
    %c0_190 = arith.constant 0 : index
    %c67_191 = arith.constant 67 : index
    %365 = vector.load %arg7[%c0_189, %c0_190, %c67_191] : memref<2x1x358xf32, #tpu.memory_space<vmem>>, vector<2x1x256xf32>
    %366 = vector.broadcast %361 : f32 to vector<2x1x256xf32>
    %367 = arith.mulf %366, %365 : vector<2x1x256xf32>
    %368 = arith.addf %364, %367 : vector<2x1x256xf32>
    %369 = arith.addf %359, %368 : vector<2x1x256xf32>
    %c38 = arith.constant 38 : index
    %370 = memref.load %arg4[%c38] : memref<98xf32, #tpu.memory_space<smem>>
    %c87 = arith.constant 87 : index
    %371 = memref.load %arg4[%c87] : memref<98xf32, #tpu.memory_space<smem>>
    %c0_192 = arith.constant 0 : index
    %c0_193 = arith.constant 0 : index
    %c83 = arith.constant 83 : index
    %372 = vector.load %arg6[%c0_192, %c0_193, %c83] : memref<2x1x358xf32, #tpu.memory_space<vmem>>, vector<2x1x256xf32>
    %373 = vector.broadcast %370 : f32 to vector<2x1x256xf32>
    %374 = arith.mulf %373, %372 : vector<2x1x256xf32>
    %c0_194 = arith.constant 0 : index
    %c0_195 = arith.constant 0 : index
    %c83_196 = arith.constant 83 : index
    %375 = vector.load %arg7[%c0_194, %c0_195, %c83_196] : memref<2x1x358xf32, #tpu.memory_space<vmem>>, vector<2x1x256xf32>
    %376 = vector.broadcast %371 : f32 to vector<2x1x256xf32>
    %377 = arith.mulf %376, %375 : vector<2x1x256xf32>
    %378 = arith.addf %374, %377 : vector<2x1x256xf32>
    %379 = arith.addf %369, %378 : vector<2x1x256xf32>
    %c45 = arith.constant 45 : index
    %380 = memref.load %arg4[%c45] : memref<98xf32, #tpu.memory_space<smem>>
    %c94 = arith.constant 94 : index
    %381 = memref.load %arg4[%c94] : memref<98xf32, #tpu.memory_space<smem>>
    %c0_197 = arith.constant 0 : index
    %c0_198 = arith.constant 0 : index
    %c99 = arith.constant 99 : index
    %382 = vector.load %arg6[%c0_197, %c0_198, %c99] : memref<2x1x358xf32, #tpu.memory_space<vmem>>, vector<2x1x256xf32>
    %383 = vector.broadcast %380 : f32 to vector<2x1x256xf32>
    %384 = arith.mulf %383, %382 : vector<2x1x256xf32>
    %c0_199 = arith.constant 0 : index
    %c0_200 = arith.constant 0 : index
    %c99_201 = arith.constant 99 : index
    %385 = vector.load %arg7[%c0_199, %c0_200, %c99_201] : memref<2x1x358xf32, #tpu.memory_space<vmem>>, vector<2x1x256xf32>
    %386 = vector.broadcast %381 : f32 to vector<2x1x256xf32>
    %387 = arith.mulf %386, %385 : vector<2x1x256xf32>
    %388 = arith.addf %384, %387 : vector<2x1x256xf32>
    %389 = arith.addf %379, %388 : vector<2x1x256xf32>
    %cst_202 = arith.constant 0.000000e+00 : f32
    %390 = vector.shape_cast %318 : vector<1x1x256xi1> to vector<1x1x256xi1>
    %391 = vector.broadcast %390 : vector<1x1x256xi1> to vector<2x1x256xi1>
    %392 = vector.broadcast %cst_202 : f32 to vector<2x1x256xf32>
    %393 = arith.select %391, %389, %392 : vector<2x1x256xi1>, vector<2x1x256xf32>
    %394 = arith.addf %313, %393 : vector<2x1x256xf32>
    %c-1_i32 = arith.constant -1 : i32
    %395 = vector.broadcast %c-1_i32 : i32 to vector<1x1x256xi32>
    %396 = arith.cmpi sge, %69, %395 : vector<1x1x256xi32>
    %c15_i32 = arith.constant 15 : i32
    %397 = vector.broadcast %c15_i32 : i32 to vector<1x1x256xi32>
    %398 = arith.cmpi slt, %69, %397 : vector<1x1x256xi32>
    %399 = arith.andi %396, %398 : vector<1x1x256xi1>
    %cst_203 = arith.constant 0.000000e+00 : f32
    %400 = vector.broadcast %cst_203 : f32 to vector<2x1x256xf32>
    %c4 = arith.constant 4 : index
    %401 = memref.load %arg4[%c4] : memref<98xf32, #tpu.memory_space<smem>>
    %c53 = arith.constant 53 : index
    %402 = memref.load %arg4[%c53] : memref<98xf32, #tpu.memory_space<smem>>
    %c0_204 = arith.constant 0 : index
    %c0_205 = arith.constant 0 : index
    %c4_206 = arith.constant 4 : index
    %403 = vector.load %arg6[%c0_204, %c0_205, %c4_206] : memref<2x1x358xf32, #tpu.memory_space<vmem>>, vector<2x1x256xf32>
    %404 = vector.broadcast %401 : f32 to vector<2x1x256xf32>
    %405 = arith.mulf %404, %403 : vector<2x1x256xf32>
    %c0_207 = arith.constant 0 : index
    %c0_208 = arith.constant 0 : index
    %c4_209 = arith.constant 4 : index
    %406 = vector.load %arg7[%c0_207, %c0_208, %c4_209] : memref<2x1x358xf32, #tpu.memory_space<vmem>>, vector<2x1x256xf32>
    %407 = vector.broadcast %402 : f32 to vector<2x1x256xf32>
    %408 = arith.mulf %407, %406 : vector<2x1x256xf32>
    %409 = arith.addf %405, %408 : vector<2x1x256xf32>
    %410 = arith.addf %400, %409 : vector<2x1x256xf32>
    %c11 = arith.constant 11 : index
    %411 = memref.load %arg4[%c11] : memref<98xf32, #tpu.memory_space<smem>>
    %c60 = arith.constant 60 : index
    %412 = memref.load %arg4[%c60] : memref<98xf32, #tpu.memory_space<smem>>
    %c0_210 = arith.constant 0 : index
    %c0_211 = arith.constant 0 : index
    %c20 = arith.constant 20 : index
    %413 = vector.load %arg6[%c0_210, %c0_211, %c20] : memref<2x1x358xf32, #tpu.memory_space<vmem>>, vector<2x1x256xf32>
    %414 = vector.broadcast %411 : f32 to vector<2x1x256xf32>
    %415 = arith.mulf %414, %413 : vector<2x1x256xf32>
    %c0_212 = arith.constant 0 : index
    %c0_213 = arith.constant 0 : index
    %c20_214 = arith.constant 20 : index
    %416 = vector.load %arg7[%c0_212, %c0_213, %c20_214] : memref<2x1x358xf32, #tpu.memory_space<vmem>>, vector<2x1x256xf32>
    %417 = vector.broadcast %412 : f32 to vector<2x1x256xf32>
    %418 = arith.mulf %417, %416 : vector<2x1x256xf32>
    %419 = arith.addf %415, %418 : vector<2x1x256xf32>
    %420 = arith.addf %410, %419 : vector<2x1x256xf32>
    %c18_215 = arith.constant 18 : index
    %421 = memref.load %arg4[%c18_215] : memref<98xf32, #tpu.memory_space<smem>>
    %c67_216 = arith.constant 67 : index
    %422 = memref.load %arg4[%c67_216] : memref<98xf32, #tpu.memory_space<smem>>
    %c0_217 = arith.constant 0 : index
    %c0_218 = arith.constant 0 : index
    %c36_219 = arith.constant 36 : index
    %423 = vector.load %arg6[%c0_217, %c0_218, %c36_219] : memref<2x1x358xf32, #tpu.memory_space<vmem>>, vector<2x1x256xf32>
    %424 = vector.broadcast %421 : f32 to vector<2x1x256xf32>
    %425 = arith.mulf %424, %423 : vector<2x1x256xf32>
    %c0_220 = arith.constant 0 : index
    %c0_221 = arith.constant 0 : index
    %c36_222 = arith.constant 36 : index
    %426 = vector.load %arg7[%c0_220, %c0_221, %c36_222] : memref<2x1x358xf32, #tpu.memory_space<vmem>>, vector<2x1x256xf32>
    %427 = vector.broadcast %422 : f32 to vector<2x1x256xf32>
    %428 = arith.mulf %427, %426 : vector<2x1x256xf32>
    %429 = arith.addf %425, %428 : vector<2x1x256xf32>
    %430 = arith.addf %420, %429 : vector<2x1x256xf32>
    %c25 = arith.constant 25 : index
    %431 = memref.load %arg4[%c25] : memref<98xf32, #tpu.memory_space<smem>>
    %c74 = arith.constant 74 : index
    %432 = memref.load %arg4[%c74] : memref<98xf32, #tpu.memory_space<smem>>
    %c0_223 = arith.constant 0 : index
    %c0_224 = arith.constant 0 : index
    %c52_225 = arith.constant 52 : index
    %433 = vector.load %arg6[%c0_223, %c0_224, %c52_225] : memref<2x1x358xf32, #tpu.memory_space<vmem>>, vector<2x1x256xf32>
    %434 = vector.broadcast %431 : f32 to vector<2x1x256xf32>
    %435 = arith.mulf %434, %433 : vector<2x1x256xf32>
    %c0_226 = arith.constant 0 : index
    %c0_227 = arith.constant 0 : index
    %c52_228 = arith.constant 52 : index
    %436 = vector.load %arg7[%c0_226, %c0_227, %c52_228] : memref<2x1x358xf32, #tpu.memory_space<vmem>>, vector<2x1x256xf32>
    %437 = vector.broadcast %432 : f32 to vector<2x1x256xf32>
    %438 = arith.mulf %437, %436 : vector<2x1x256xf32>
    %439 = arith.addf %435, %438 : vector<2x1x256xf32>
    %440 = arith.addf %430, %439 : vector<2x1x256xf32>
    %c32_229 = arith.constant 32 : index
    %441 = memref.load %arg4[%c32_229] : memref<98xf32, #tpu.memory_space<smem>>
    %c81_230 = arith.constant 81 : index
    %442 = memref.load %arg4[%c81_230] : memref<98xf32, #tpu.memory_space<smem>>
    %c0_231 = arith.constant 0 : index
    %c0_232 = arith.constant 0 : index
    %c68 = arith.constant 68 : index
    %443 = vector.load %arg6[%c0_231, %c0_232, %c68] : memref<2x1x358xf32, #tpu.memory_space<vmem>>, vector<2x1x256xf32>
    %444 = vector.broadcast %441 : f32 to vector<2x1x256xf32>
    %445 = arith.mulf %444, %443 : vector<2x1x256xf32>
    %c0_233 = arith.constant 0 : index
    %c0_234 = arith.constant 0 : index
    %c68_235 = arith.constant 68 : index
    %446 = vector.load %arg7[%c0_233, %c0_234, %c68_235] : memref<2x1x358xf32, #tpu.memory_space<vmem>>, vector<2x1x256xf32>
    %447 = vector.broadcast %442 : f32 to vector<2x1x256xf32>
    %448 = arith.mulf %447, %446 : vector<2x1x256xf32>
    %449 = arith.addf %445, %448 : vector<2x1x256xf32>
    %450 = arith.addf %440, %449 : vector<2x1x256xf32>
    %c39 = arith.constant 39 : index
    %451 = memref.load %arg4[%c39] : memref<98xf32, #tpu.memory_space<smem>>
    %c88 = arith.constant 88 : index
    %452 = memref.load %arg4[%c88] : memref<98xf32, #tpu.memory_space<smem>>
    %c0_236 = arith.constant 0 : index
    %c0_237 = arith.constant 0 : index
    %c84_238 = arith.constant 84 : index
    %453 = vector.load %arg6[%c0_236, %c0_237, %c84_238] : memref<2x1x358xf32, #tpu.memory_space<vmem>>, vector<2x1x256xf32>
    %454 = vector.broadcast %451 : f32 to vector<2x1x256xf32>
    %455 = arith.mulf %454, %453 : vector<2x1x256xf32>
    %c0_239 = arith.constant 0 : index
    %c0_240 = arith.constant 0 : index
    %c84_241 = arith.constant 84 : index
    %456 = vector.load %arg7[%c0_239, %c0_240, %c84_241] : memref<2x1x358xf32, #tpu.memory_space<vmem>>, vector<2x1x256xf32>
    %457 = vector.broadcast %452 : f32 to vector<2x1x256xf32>
    %458 = arith.mulf %457, %456 : vector<2x1x256xf32>
    %459 = arith.addf %455, %458 : vector<2x1x256xf32>
    %460 = arith.addf %450, %459 : vector<2x1x256xf32>
    %c46 = arith.constant 46 : index
    %461 = memref.load %arg4[%c46] : memref<98xf32, #tpu.memory_space<smem>>
    %c95 = arith.constant 95 : index
    %462 = memref.load %arg4[%c95] : memref<98xf32, #tpu.memory_space<smem>>
    %c0_242 = arith.constant 0 : index
    %c0_243 = arith.constant 0 : index
    %c100 = arith.constant 100 : index
    %463 = vector.load %arg6[%c0_242, %c0_243, %c100] : memref<2x1x358xf32, #tpu.memory_space<vmem>>, vector<2x1x256xf32>
    %464 = vector.broadcast %461 : f32 to vector<2x1x256xf32>
    %465 = arith.mulf %464, %463 : vector<2x1x256xf32>
    %c0_244 = arith.constant 0 : index
    %c0_245 = arith.constant 0 : index
    %c100_246 = arith.constant 100 : index
    %466 = vector.load %arg7[%c0_244, %c0_245, %c100_246] : memref<2x1x358xf32, #tpu.memory_space<vmem>>, vector<2x1x256xf32>
    %467 = vector.broadcast %462 : f32 to vector<2x1x256xf32>
    %468 = arith.mulf %467, %466 : vector<2x1x256xf32>
    %469 = arith.addf %465, %468 : vector<2x1x256xf32>
    %470 = arith.addf %460, %469 : vector<2x1x256xf32>
    %cst_247 = arith.constant 0.000000e+00 : f32
    %471 = vector.shape_cast %399 : vector<1x1x256xi1> to vector<1x1x256xi1>
    %472 = vector.broadcast %471 : vector<1x1x256xi1> to vector<2x1x256xi1>
    %473 = vector.broadcast %cst_247 : f32 to vector<2x1x256xf32>
    %474 = arith.select %472, %470, %473 : vector<2x1x256xi1>, vector<2x1x256xf32>
    %475 = arith.addf %394, %474 : vector<2x1x256xf32>
    %c-2_i32 = arith.constant -2 : i32
    %476 = vector.broadcast %c-2_i32 : i32 to vector<1x1x256xi32>
    %477 = arith.cmpi sge, %69, %476 : vector<1x1x256xi32>
    %c14_i32 = arith.constant 14 : i32
    %478 = vector.broadcast %c14_i32 : i32 to vector<1x1x256xi32>
    %479 = arith.cmpi slt, %69, %478 : vector<1x1x256xi32>
    %480 = arith.andi %477, %479 : vector<1x1x256xi1>
    %cst_248 = arith.constant 0.000000e+00 : f32
    %481 = vector.broadcast %cst_248 : f32 to vector<2x1x256xf32>
    %c5 = arith.constant 5 : index
    %482 = memref.load %arg4[%c5] : memref<98xf32, #tpu.memory_space<smem>>
    %c54 = arith.constant 54 : index
    %483 = memref.load %arg4[%c54] : memref<98xf32, #tpu.memory_space<smem>>
    %c0_249 = arith.constant 0 : index
    %c0_250 = arith.constant 0 : index
    %c5_251 = arith.constant 5 : index
    %484 = vector.load %arg6[%c0_249, %c0_250, %c5_251] : memref<2x1x358xf32, #tpu.memory_space<vmem>>, vector<2x1x256xf32>
    %485 = vector.broadcast %482 : f32 to vector<2x1x256xf32>
    %486 = arith.mulf %485, %484 : vector<2x1x256xf32>
    %c0_252 = arith.constant 0 : index
    %c0_253 = arith.constant 0 : index
    %c5_254 = arith.constant 5 : index
    %487 = vector.load %arg7[%c0_252, %c0_253, %c5_254] : memref<2x1x358xf32, #tpu.memory_space<vmem>>, vector<2x1x256xf32>
    %488 = vector.broadcast %483 : f32 to vector<2x1x256xf32>
    %489 = arith.mulf %488, %487 : vector<2x1x256xf32>
    %490 = arith.addf %486, %489 : vector<2x1x256xf32>
    %491 = arith.addf %481, %490 : vector<2x1x256xf32>
    %c12 = arith.constant 12 : index
    %492 = memref.load %arg4[%c12] : memref<98xf32, #tpu.memory_space<smem>>
    %c61 = arith.constant 61 : index
    %493 = memref.load %arg4[%c61] : memref<98xf32, #tpu.memory_space<smem>>
    %c0_255 = arith.constant 0 : index
    %c0_256 = arith.constant 0 : index
    %c21_257 = arith.constant 21 : index
    %494 = vector.load %arg6[%c0_255, %c0_256, %c21_257] : memref<2x1x358xf32, #tpu.memory_space<vmem>>, vector<2x1x256xf32>
    %495 = vector.broadcast %492 : f32 to vector<2x1x256xf32>
    %496 = arith.mulf %495, %494 : vector<2x1x256xf32>
    %c0_258 = arith.constant 0 : index
    %c0_259 = arith.constant 0 : index
    %c21_260 = arith.constant 21 : index
    %497 = vector.load %arg7[%c0_258, %c0_259, %c21_260] : memref<2x1x358xf32, #tpu.memory_space<vmem>>, vector<2x1x256xf32>
    %498 = vector.broadcast %493 : f32 to vector<2x1x256xf32>
    %499 = arith.mulf %498, %497 : vector<2x1x256xf32>
    %500 = arith.addf %496, %499 : vector<2x1x256xf32>
    %501 = arith.addf %491, %500 : vector<2x1x256xf32>
    %c19_261 = arith.constant 19 : index
    %502 = memref.load %arg4[%c19_261] : memref<98xf32, #tpu.memory_space<smem>>
    %c68_262 = arith.constant 68 : index
    %503 = memref.load %arg4[%c68_262] : memref<98xf32, #tpu.memory_space<smem>>
    %c0_263 = arith.constant 0 : index
    %c0_264 = arith.constant 0 : index
    %c37_265 = arith.constant 37 : index
    %504 = vector.load %arg6[%c0_263, %c0_264, %c37_265] : memref<2x1x358xf32, #tpu.memory_space<vmem>>, vector<2x1x256xf32>
    %505 = vector.broadcast %502 : f32 to vector<2x1x256xf32>
    %506 = arith.mulf %505, %504 : vector<2x1x256xf32>
    %c0_266 = arith.constant 0 : index
    %c0_267 = arith.constant 0 : index
    %c37_268 = arith.constant 37 : index
    %507 = vector.load %arg7[%c0_266, %c0_267, %c37_268] : memref<2x1x358xf32, #tpu.memory_space<vmem>>, vector<2x1x256xf32>
    %508 = vector.broadcast %503 : f32 to vector<2x1x256xf32>
    %509 = arith.mulf %508, %507 : vector<2x1x256xf32>
    %510 = arith.addf %506, %509 : vector<2x1x256xf32>
    %511 = arith.addf %501, %510 : vector<2x1x256xf32>
    %c26 = arith.constant 26 : index
    %512 = memref.load %arg4[%c26] : memref<98xf32, #tpu.memory_space<smem>>
    %c75 = arith.constant 75 : index
    %513 = memref.load %arg4[%c75] : memref<98xf32, #tpu.memory_space<smem>>
    %c0_269 = arith.constant 0 : index
    %c0_270 = arith.constant 0 : index
    %c53_271 = arith.constant 53 : index
    %514 = vector.load %arg6[%c0_269, %c0_270, %c53_271] : memref<2x1x358xf32, #tpu.memory_space<vmem>>, vector<2x1x256xf32>
    %515 = vector.broadcast %512 : f32 to vector<2x1x256xf32>
    %516 = arith.mulf %515, %514 : vector<2x1x256xf32>
    %c0_272 = arith.constant 0 : index
    %c0_273 = arith.constant 0 : index
    %c53_274 = arith.constant 53 : index
    %517 = vector.load %arg7[%c0_272, %c0_273, %c53_274] : memref<2x1x358xf32, #tpu.memory_space<vmem>>, vector<2x1x256xf32>
    %518 = vector.broadcast %513 : f32 to vector<2x1x256xf32>
    %519 = arith.mulf %518, %517 : vector<2x1x256xf32>
    %520 = arith.addf %516, %519 : vector<2x1x256xf32>
    %521 = arith.addf %511, %520 : vector<2x1x256xf32>
    %c33_275 = arith.constant 33 : index
    %522 = memref.load %arg4[%c33_275] : memref<98xf32, #tpu.memory_space<smem>>
    %c82_276 = arith.constant 82 : index
    %523 = memref.load %arg4[%c82_276] : memref<98xf32, #tpu.memory_space<smem>>
    %c0_277 = arith.constant 0 : index
    %c0_278 = arith.constant 0 : index
    %c69 = arith.constant 69 : index
    %524 = vector.load %arg6[%c0_277, %c0_278, %c69] : memref<2x1x358xf32, #tpu.memory_space<vmem>>, vector<2x1x256xf32>
    %525 = vector.broadcast %522 : f32 to vector<2x1x256xf32>
    %526 = arith.mulf %525, %524 : vector<2x1x256xf32>
    %c0_279 = arith.constant 0 : index
    %c0_280 = arith.constant 0 : index
    %c69_281 = arith.constant 69 : index
    %527 = vector.load %arg7[%c0_279, %c0_280, %c69_281] : memref<2x1x358xf32, #tpu.memory_space<vmem>>, vector<2x1x256xf32>
    %528 = vector.broadcast %523 : f32 to vector<2x1x256xf32>
    %529 = arith.mulf %528, %527 : vector<2x1x256xf32>
    %530 = arith.addf %526, %529 : vector<2x1x256xf32>
    %531 = arith.addf %521, %530 : vector<2x1x256xf32>
    %c40 = arith.constant 40 : index
    %532 = memref.load %arg4[%c40] : memref<98xf32, #tpu.memory_space<smem>>
    %c89 = arith.constant 89 : index
    %533 = memref.load %arg4[%c89] : memref<98xf32, #tpu.memory_space<smem>>
    %c0_282 = arith.constant 0 : index
    %c0_283 = arith.constant 0 : index
    %c85_284 = arith.constant 85 : index
    %534 = vector.load %arg6[%c0_282, %c0_283, %c85_284] : memref<2x1x358xf32, #tpu.memory_space<vmem>>, vector<2x1x256xf32>
    %535 = vector.broadcast %532 : f32 to vector<2x1x256xf32>
    %536 = arith.mulf %535, %534 : vector<2x1x256xf32>
    %c0_285 = arith.constant 0 : index
    %c0_286 = arith.constant 0 : index
    %c85_287 = arith.constant 85 : index
    %537 = vector.load %arg7[%c0_285, %c0_286, %c85_287] : memref<2x1x358xf32, #tpu.memory_space<vmem>>, vector<2x1x256xf32>
    %538 = vector.broadcast %533 : f32 to vector<2x1x256xf32>
    %539 = arith.mulf %538, %537 : vector<2x1x256xf32>
    %540 = arith.addf %536, %539 : vector<2x1x256xf32>
    %541 = arith.addf %531, %540 : vector<2x1x256xf32>
    %c47 = arith.constant 47 : index
    %542 = memref.load %arg4[%c47] : memref<98xf32, #tpu.memory_space<smem>>
    %c96_288 = arith.constant 96 : index
    %543 = memref.load %arg4[%c96_288] : memref<98xf32, #tpu.memory_space<smem>>
    %c0_289 = arith.constant 0 : index
    %c0_290 = arith.constant 0 : index
    %c101 = arith.constant 101 : index
    %544 = vector.load %arg6[%c0_289, %c0_290, %c101] : memref<2x1x358xf32, #tpu.memory_space<vmem>>, vector<2x1x256xf32>
    %545 = vector.broadcast %542 : f32 to vector<2x1x256xf32>
    %546 = arith.mulf %545, %544 : vector<2x1x256xf32>
    %c0_291 = arith.constant 0 : index
    %c0_292 = arith.constant 0 : index
    %c101_293 = arith.constant 101 : index
    %547 = vector.load %arg7[%c0_291, %c0_292, %c101_293] : memref<2x1x358xf32, #tpu.memory_space<vmem>>, vector<2x1x256xf32>
    %548 = vector.broadcast %543 : f32 to vector<2x1x256xf32>
    %549 = arith.mulf %548, %547 : vector<2x1x256xf32>
    %550 = arith.addf %546, %549 : vector<2x1x256xf32>
    %551 = arith.addf %541, %550 : vector<2x1x256xf32>
    %cst_294 = arith.constant 0.000000e+00 : f32
    %552 = vector.shape_cast %480 : vector<1x1x256xi1> to vector<1x1x256xi1>
    %553 = vector.broadcast %552 : vector<1x1x256xi1> to vector<2x1x256xi1>
    %554 = vector.broadcast %cst_294 : f32 to vector<2x1x256xf32>
    %555 = arith.select %553, %551, %554 : vector<2x1x256xi1>, vector<2x1x256xf32>
    %556 = arith.addf %475, %555 : vector<2x1x256xf32>
    %c-3_i32 = arith.constant -3 : i32
    %557 = vector.broadcast %c-3_i32 : i32 to vector<1x1x256xi32>
    %558 = arith.cmpi sge, %69, %557 : vector<1x1x256xi32>
    %c13_i32 = arith.constant 13 : i32
    %559 = vector.broadcast %c13_i32 : i32 to vector<1x1x256xi32>
    %560 = arith.cmpi slt, %69, %559 : vector<1x1x256xi32>
    %561 = arith.andi %558, %560 : vector<1x1x256xi1>
    %cst_295 = arith.constant 0.000000e+00 : f32
    %562 = vector.broadcast %cst_295 : f32 to vector<2x1x256xf32>
    %c6 = arith.constant 6 : index
    %563 = memref.load %arg4[%c6] : memref<98xf32, #tpu.memory_space<smem>>
    %c55 = arith.constant 55 : index
    %564 = memref.load %arg4[%c55] : memref<98xf32, #tpu.memory_space<smem>>
    %c0_296 = arith.constant 0 : index
    %c0_297 = arith.constant 0 : index
    %c6_298 = arith.constant 6 : index
    %565 = vector.load %arg6[%c0_296, %c0_297, %c6_298] : memref<2x1x358xf32, #tpu.memory_space<vmem>>, vector<2x1x256xf32>
    %566 = vector.broadcast %563 : f32 to vector<2x1x256xf32>
    %567 = arith.mulf %566, %565 : vector<2x1x256xf32>
    %c0_299 = arith.constant 0 : index
    %c0_300 = arith.constant 0 : index
    %c6_301 = arith.constant 6 : index
    %568 = vector.load %arg7[%c0_299, %c0_300, %c6_301] : memref<2x1x358xf32, #tpu.memory_space<vmem>>, vector<2x1x256xf32>
    %569 = vector.broadcast %564 : f32 to vector<2x1x256xf32>
    %570 = arith.mulf %569, %568 : vector<2x1x256xf32>
    %571 = arith.addf %567, %570 : vector<2x1x256xf32>
    %572 = arith.addf %562, %571 : vector<2x1x256xf32>
    %c13 = arith.constant 13 : index
    %573 = memref.load %arg4[%c13] : memref<98xf32, #tpu.memory_space<smem>>
    %c62 = arith.constant 62 : index
    %574 = memref.load %arg4[%c62] : memref<98xf32, #tpu.memory_space<smem>>
    %c0_302 = arith.constant 0 : index
    %c0_303 = arith.constant 0 : index
    %c22_304 = arith.constant 22 : index
    %575 = vector.load %arg6[%c0_302, %c0_303, %c22_304] : memref<2x1x358xf32, #tpu.memory_space<vmem>>, vector<2x1x256xf32>
    %576 = vector.broadcast %573 : f32 to vector<2x1x256xf32>
    %577 = arith.mulf %576, %575 : vector<2x1x256xf32>
    %c0_305 = arith.constant 0 : index
    %c0_306 = arith.constant 0 : index
    %c22_307 = arith.constant 22 : index
    %578 = vector.load %arg7[%c0_305, %c0_306, %c22_307] : memref<2x1x358xf32, #tpu.memory_space<vmem>>, vector<2x1x256xf32>
    %579 = vector.broadcast %574 : f32 to vector<2x1x256xf32>
    %580 = arith.mulf %579, %578 : vector<2x1x256xf32>
    %581 = arith.addf %577, %580 : vector<2x1x256xf32>
    %582 = arith.addf %572, %581 : vector<2x1x256xf32>
    %c20_308 = arith.constant 20 : index
    %583 = memref.load %arg4[%c20_308] : memref<98xf32, #tpu.memory_space<smem>>
    %c69_309 = arith.constant 69 : index
    %584 = memref.load %arg4[%c69_309] : memref<98xf32, #tpu.memory_space<smem>>
    %c0_310 = arith.constant 0 : index
    %c0_311 = arith.constant 0 : index
    %c38_312 = arith.constant 38 : index
    %585 = vector.load %arg6[%c0_310, %c0_311, %c38_312] : memref<2x1x358xf32, #tpu.memory_space<vmem>>, vector<2x1x256xf32>
    %586 = vector.broadcast %583 : f32 to vector<2x1x256xf32>
    %587 = arith.mulf %586, %585 : vector<2x1x256xf32>
    %c0_313 = arith.constant 0 : index
    %c0_314 = arith.constant 0 : index
    %c38_315 = arith.constant 38 : index
    %588 = vector.load %arg7[%c0_313, %c0_314, %c38_315] : memref<2x1x358xf32, #tpu.memory_space<vmem>>, vector<2x1x256xf32>
    %589 = vector.broadcast %584 : f32 to vector<2x1x256xf32>
    %590 = arith.mulf %589, %588 : vector<2x1x256xf32>
    %591 = arith.addf %587, %590 : vector<2x1x256xf32>
    %592 = arith.addf %582, %591 : vector<2x1x256xf32>
    %c27 = arith.constant 27 : index
    %593 = memref.load %arg4[%c27] : memref<98xf32, #tpu.memory_space<smem>>
    %c76 = arith.constant 76 : index
    %594 = memref.load %arg4[%c76] : memref<98xf32, #tpu.memory_space<smem>>
    %c0_316 = arith.constant 0 : index
    %c0_317 = arith.constant 0 : index
    %c54_318 = arith.constant 54 : index
    %595 = vector.load %arg6[%c0_316, %c0_317, %c54_318] : memref<2x1x358xf32, #tpu.memory_space<vmem>>, vector<2x1x256xf32>
    %596 = vector.broadcast %593 : f32 to vector<2x1x256xf32>
    %597 = arith.mulf %596, %595 : vector<2x1x256xf32>
    %c0_319 = arith.constant 0 : index
    %c0_320 = arith.constant 0 : index
    %c54_321 = arith.constant 54 : index
    %598 = vector.load %arg7[%c0_319, %c0_320, %c54_321] : memref<2x1x358xf32, #tpu.memory_space<vmem>>, vector<2x1x256xf32>
    %599 = vector.broadcast %594 : f32 to vector<2x1x256xf32>
    %600 = arith.mulf %599, %598 : vector<2x1x256xf32>
    %601 = arith.addf %597, %600 : vector<2x1x256xf32>
    %602 = arith.addf %592, %601 : vector<2x1x256xf32>
    %c34_322 = arith.constant 34 : index
    %603 = memref.load %arg4[%c34_322] : memref<98xf32, #tpu.memory_space<smem>>
    %c83_323 = arith.constant 83 : index
    %604 = memref.load %arg4[%c83_323] : memref<98xf32, #tpu.memory_space<smem>>
    %c0_324 = arith.constant 0 : index
    %c0_325 = arith.constant 0 : index
    %c70_326 = arith.constant 70 : index
    %605 = vector.load %arg6[%c0_324, %c0_325, %c70_326] : memref<2x1x358xf32, #tpu.memory_space<vmem>>, vector<2x1x256xf32>
    %606 = vector.broadcast %603 : f32 to vector<2x1x256xf32>
    %607 = arith.mulf %606, %605 : vector<2x1x256xf32>
    %c0_327 = arith.constant 0 : index
    %c0_328 = arith.constant 0 : index
    %c70_329 = arith.constant 70 : index
    %608 = vector.load %arg7[%c0_327, %c0_328, %c70_329] : memref<2x1x358xf32, #tpu.memory_space<vmem>>, vector<2x1x256xf32>
    %609 = vector.broadcast %604 : f32 to vector<2x1x256xf32>
    %610 = arith.mulf %609, %608 : vector<2x1x256xf32>
    %611 = arith.addf %607, %610 : vector<2x1x256xf32>
    %612 = arith.addf %602, %611 : vector<2x1x256xf32>
    %c41 = arith.constant 41 : index
    %613 = memref.load %arg4[%c41] : memref<98xf32, #tpu.memory_space<smem>>
    %c90 = arith.constant 90 : index
    %614 = memref.load %arg4[%c90] : memref<98xf32, #tpu.memory_space<smem>>
    %c0_330 = arith.constant 0 : index
    %c0_331 = arith.constant 0 : index
    %c86_332 = arith.constant 86 : index
    %615 = vector.load %arg6[%c0_330, %c0_331, %c86_332] : memref<2x1x358xf32, #tpu.memory_space<vmem>>, vector<2x1x256xf32>
    %616 = vector.broadcast %613 : f32 to vector<2x1x256xf32>
    %617 = arith.mulf %616, %615 : vector<2x1x256xf32>
    %c0_333 = arith.constant 0 : index
    %c0_334 = arith.constant 0 : index
    %c86_335 = arith.constant 86 : index
    %618 = vector.load %arg7[%c0_333, %c0_334, %c86_335] : memref<2x1x358xf32, #tpu.memory_space<vmem>>, vector<2x1x256xf32>
    %619 = vector.broadcast %614 : f32 to vector<2x1x256xf32>
    %620 = arith.mulf %619, %618 : vector<2x1x256xf32>
    %621 = arith.addf %617, %620 : vector<2x1x256xf32>
    %622 = arith.addf %612, %621 : vector<2x1x256xf32>
    %c48_336 = arith.constant 48 : index
    %623 = memref.load %arg4[%c48_336] : memref<98xf32, #tpu.memory_space<smem>>
    %c97_337 = arith.constant 97 : index
    %624 = memref.load %arg4[%c97_337] : memref<98xf32, #tpu.memory_space<smem>>
    %c0_338 = arith.constant 0 : index
    %c0_339 = arith.constant 0 : index
    %c102 = arith.constant 102 : index
    %625 = vector.load %arg6[%c0_338, %c0_339, %c102] : memref<2x1x358xf32, #tpu.memory_space<vmem>>, vector<2x1x256xf32>
    %626 = vector.broadcast %623 : f32 to vector<2x1x256xf32>
    %627 = arith.mulf %626, %625 : vector<2x1x256xf32>
    %c0_340 = arith.constant 0 : index
    %c0_341 = arith.constant 0 : index
    %c102_342 = arith.constant 102 : index
    %628 = vector.load %arg7[%c0_340, %c0_341, %c102_342] : memref<2x1x358xf32, #tpu.memory_space<vmem>>, vector<2x1x256xf32>
    %629 = vector.broadcast %624 : f32 to vector<2x1x256xf32>
    %630 = arith.mulf %629, %628 : vector<2x1x256xf32>
    %631 = arith.addf %627, %630 : vector<2x1x256xf32>
    %632 = arith.addf %622, %631 : vector<2x1x256xf32>
    %cst_343 = arith.constant 0.000000e+00 : f32
    %633 = vector.shape_cast %561 : vector<1x1x256xi1> to vector<1x1x256xi1>
    %634 = vector.broadcast %633 : vector<1x1x256xi1> to vector<2x1x256xi1>
    %635 = vector.broadcast %cst_343 : f32 to vector<2x1x256xf32>
    %636 = arith.select %634, %632, %635 : vector<2x1x256xi1>, vector<2x1x256xf32>
    %637 = arith.addf %556, %636 : vector<2x1x256xf32>
    %cst_344 = arith.constant 0.000000e+00 : f32
    %638 = vector.broadcast %cst_344 : f32 to vector<2x1x256xf32>
    %639 = arith.subf %638, %637 : vector<2x1x256xf32>
    %640 = math.exp %639 : vector<2x1x256xf32>
    %cst_345 = arith.constant 1.000000e+00 : f32
    %641 = vector.broadcast %cst_345 : f32 to vector<2x1x256xf32>
    %642 = arith.addf %641, %640 : vector<2x1x256xf32>
    %cst_346 = arith.constant 1.000000e+00 : f32
    %643 = vector.broadcast %cst_346 : f32 to vector<2x1x256xf32>
    %644 = arith.divf %643, %642 : vector<2x1x256xf32>
    %645 = vector.broadcast %644 : vector<2x1x256xf32> to vector<2x16x256xf32>
    %646 = arith.mulf %40, %645 : vector<2x16x256xf32>
    %c0_347 = arith.constant 0 : index
    %c0_348 = arith.constant 0 : index
    %c0_349 = arith.constant 0 : index
    %647 = vector.load %arg5[%c0_347, %c0_348, %c0_349] : memref<2x16x256xf32, #tpu.memory_space<vmem>>, vector<2x16x256xf32>
    tpu.vector_store %arg5[%c0_347, %c0_348, %c0_349], %646 {strides = array<i32>} : memref<2x16x256xf32, #tpu.memory_space<vmem>>, vector<2x16x256xf32>,
    return
  }
  func.func @transform_0(%arg0: i32) -> (i32, i32, i32) {
    %c0_i32 = arith.constant 0 : i32
    %c0_i32_0 = arith.constant 0 : i32
    %c0_i32_1 = arith.constant 0 : i32
    return %arg0, %c0_i32, %c0_i32_0 : i32, i32, i32
  }
  func.func @transform_1(%arg0: i32) -> (i32, i32) {
    %c0_i32 = arith.constant 0 : i32
    %c0_i32_0 = arith.constant 0 : i32
    %c0_i32_1 = arith.constant 0 : i32
    return %c0_i32, %c0_i32_0 : i32, i32
  }
  func.func @transform_2(%arg0: i32) -> (i32, i32) {
    %c0_i32 = arith.constant 0 : i32
    %c0_i32_0 = arith.constant 0 : i32
    %c0_i32_1 = arith.constant 0 : i32
    return %c0_i32, %c0_i32_0 : i32, i32
  }
  func.func @transform_3(%arg0: i32) -> i32 {
    %c0_i32 = arith.constant 0 : i32
    %c0_i32_0 = arith.constant 0 : i32
    return %c0_i32 : i32
  }
  func.func @transform_4(%arg0: i32) -> (i32, i32, i32) {
    %c0_i32 = arith.constant 0 : i32
    %c0_i32_0 = arith.constant 0 : i32
    %c0_i32_1 = arith.constant 0 : i32
    return %arg0, %c0_i32, %c0_i32_0 : i32, i32, i32
  }
}

</mosaic_0001>

<llo_original>
// kernel: cbam_forward.1
$region0: #{cbam_forward.1}
  #allocation0 [shape = 'u32[]', space=smem, size = 0x4, offset = 0x4, fixed_abs, tag = 'smem constant byte address 0x4 - core index']
  #allocation1 [shape = 'u32[144,128]{1,0:T(1,128)}', space=vmem, size = 0x12000, scoped, tag = 'internal scratch']
  #allocation2 [shape = 'f32[2,1,358]{2,1,0:T(1,128)}', space=vmem, size = 0xc00, scoped, tag = 'scratch operand']
  #allocation3 [shape = 'f32[2,1,358]{2,1,0:T(1,128)}', space=vmem, size = 0xc00, scoped, tag = 'scratch operand']
  %s0 = inlined_call_operand.vmem [shape: f32[2,16,256], index: 0, kind: input, shape index: {}]
  %s1 = inlined_call_operand.vmem [shape: f32[16,2], index: 1, kind: input, shape index: {}]
  %s2 = inlined_call_operand.vmem [shape: f32[16,2], index: 2, kind: input, shape index: {}]
  %s3 = inlined_call_operand.vmem [shape: f32[98], index: 3, kind: input, shape index: {}]
  %s4 = inlined_call_operand.vmem [shape: f32[2,16,256], index: 4, kind: output, shape index: {}]
  %s5 = sld [smem:[#allocation0]]
  $region30: #{cbam_forward.1} parent=0
    _
  %s7 = ssub.s32 1, %s5
  %s8 = scalar_select 0, %s7, %s5
  $region1: #{cbam_forward.1} parent=0
    #allocation4 [shape = 'u8[512]{0}', space=smem, size = 0x200, scoped, tag = 'input window, operand 3, single buffered']
    #allocation5 [shape = 's32[1]{0}', space=sflag, size = 0x4, scoped, tag = 'scoped memory for cbam_forward.1']
    %9 = vsyncpa [#allocation5], 0
    // Predicated region
    $region2: #{cbam_forward.1} parent=1 // pred_check
      _
    $region3: #{cbam_forward.1} parent=1 // pred_check_branch
      %11 = sbr.rel (0) target = $region5
    $region4: #{cbam_forward.1} parent=1 // pred_region
      _
    $region5: #{cbam_forward.1} parent=1 // pred_fallthru
      _
    // Predicated region
    $region6: #{cbam_forward.1} parent=1 // pred_check
      _
    $region7: #{cbam_forward.1} parent=1 // pred_check_branch
      %13 = sbr.rel (0) target = $region9
    $region8: #{cbam_forward.1} parent=1 // pred_region
      _
    $region9: #{cbam_forward.1} parent=1 // pred_fallthru
      _
    // Predicated region
    $region10: #{cbam_forward.1} parent=1 // pred_check
      _
    $region11: #{cbam_forward.1} parent=1 // pred_check_branch
      %15 = sbr.rel (0) target = $region13
    $region12: #{cbam_forward.1} parent=1 // pred_region
      _
    $region13: #{cbam_forward.1} parent=1 // pred_fallthru
      _
    // Predicated region
    $region14: #{cbam_forward.1} parent=1 // pred_check
      _
    $region15: #{cbam_forward.1} parent=1 // pred_check_branch
      %17 = sbr.rel (0) target = $region17
    $region16: #{cbam_forward.1} parent=1 // pred_region
      %s19 = ssub.s32 16, 16
      %20 = vsyncadd [#allocation5], %s19
      %s22 = sshll.u32 %s3, 4
      %s23 = int_to_ptr.vmem [resolvable:$true] %s22
      %25 = dma.vmem_to_smem %s23, 16, [#allocation4], [#allocation5]
    $region17: #{cbam_forward.1} parent=1 // pred_fallthru
      _
    // Predicated region
    $region18: #{cbam_forward.1} parent=1 // pred_check
      _
    $region19: #{cbam_forward.1} parent=1 // pred_check_branch
      %27 = sbr.rel (0) target = $region21
    $region20: #{cbam_forward.1} parent=1 // pred_region
      %28 = dma.done [#allocation5], 16
    $region21: #{cbam_forward.1} parent=1 // pred_fallthru
      _
    %29 = sfence
    %v30 = vld [vmem:[%s0] sm:$0xff]
    %v31 = vld [vmem:[%s0 + $0x8] sm:$0xff]
    %v32 = vld [vmem:[%s0 + $0x10] sm:$0xff]
    %v33 = vld [vmem:[%s0 + $0x18] sm:$0xff]
    %v34 = vld [vmem:[%s0 + $0x20] sm:$0xff]
    %v35 = vld [vmem:[%s0 + $0x28] sm:$0xff]
    %v36 = vld [vmem:[%s0 + $0x30] sm:$0xff]
    %v37 = vld [vmem:[%s0 + $0x38] sm:$0xff]
    %v38 = vadd.f32 %v30, %v31
    %39 = vadd.xlane.f32.xlu0 %v38
    %v40 = vpop.xlane.xlu0 %39
    %v41 = vadd.f32 %v32, %v33
    %42 = vadd.xlane.f32.xlu0 %v41
    %v43 = vpop.xlane.xlu0 %42
    %v44 = vadd.f32 %v34, %v35
    %45 = vadd.xlane.f32.xlu0 %v44
    %v46 = vpop.xlane.xlu0 %45
    %v47 = vadd.f32 %v36, %v37
    %48 = vadd.xlane.f32.xlu0 %v47
    %v49 = vpop.xlane.xlu0 %48
    %v50 = vmul.f32 %v40, 0.00390625
    %v51 = vmul.f32 %v43, 0.00390625
    %v52 = vmul.f32 %v46, 0.00390625
    %v53 = vmul.f32 %v49, 0.00390625
    %v54 = vmax.f32 %v30, %v31
    %55 = vmax.xlane.f32.xlu0 %v54
    %v56 = vpop.xlane.xlu0 %55
    %v57 = vmax.f32 %v32, %v33
    %58 = vmax.xlane.f32.xlu0 %v57
    %v59 = vpop.xlane.xlu0 %58
    %v60 = vmax.f32 %v34, %v35
    %61 = vmax.xlane.f32.xlu0 %v60
    %v62 = vpop.xlane.xlu0 %61
    %v63 = vmax.f32 %v36, %v37
    %64 = vmax.xlane.f32.xlu0 %v63
    %v65 = vpop.xlane.xlu0 %64
    %v66 = vld [vmem:[%s1] sm:$0xff]
    %v67 = vld [vmem:[%s1 + $0x8] sm:$0xff]
    %v68 = vld [vmem:[%s2] sm:$0xff]
    %v69 = vld [vmem:[%s2 + $0x8] sm:$0xff]
    %v70 = vmul.f32 %v50, %v66
    %v71 = vmul.f32 %v51, %v67
    %v72 = vmul.f32 %v52, %v66
    %v73 = vmul.f32 %v53, %v67
    %vm74 = vcmask 15360
    %v75 = vsel %vm74, %v70, 0.0
    %v76 = vsel %vm74, %v71, 0.0
    %v77 = vadd.f32 %v75, %v76
    %v78 = vrot.slane %v77, 4
    %v79 = vadd.f32 %v77, %v78
    %v80 = vrot.slane %v79, 2
    %v81 = vadd.f32 %v79, %v80
    %v82 = vrot.slane %v81, 1
    %v83 = vadd.f32 %v81, %v82
    %v84 = vsel %vm74, %v72, 0.0
    %v85 = vsel %vm74, %v73, 0.0
    %v86 = vadd.f32 %v84, %v85
    %v87 = vrot.slane %v86, 4
    %v88 = vadd.f32 %v86, %v87
    %v89 = vrot.slane %v88, 2
    %v90 = vadd.f32 %v88, %v89
    %v91 = vrot.slane %v90, 1
    %v92 = vadd.f32 %v90, %v91
    %v93 = vmax.f32 %v83, 0.0
    %v94 = vmax.f32 %v92, 0.0
    %v95 = vmul.f32 %v56, %v66
    %v96 = vmul.f32 %v59, %v67
    %v97 = vmul.f32 %v62, %v66
    %v98 = vmul.f32 %v65, %v67
    %v99 = vsel %vm74, %v95, 0.0
    %v100 = vsel %vm74, %v96, 0.0
    %v101 = vadd.f32 %v99, %v100
    %v102 = vrot.slane %v101, 4
    %v103 = vadd.f32 %v101, %v102
    %v104 = vrot.slane %v103, 2
    %v105 = vadd.f32 %v103, %v104
    %v106 = vrot.slane %v105, 1
    %v107 = vadd.f32 %v105, %v106
    %v108 = vsel %vm74, %v97, 0.0
    %v109 = vsel %vm74, %v98, 0.0
    %v110 = vadd.f32 %v108, %v109
    %v111 = vrot.slane %v110, 4
    %v112 = vadd.f32 %v110, %v111
    %v113 = vrot.slane %v112, 2
    %v114 = vadd.f32 %v112, %v113
    %v115 = vrot.slane %v114, 1
    %v116 = vadd.f32 %v114, %v115
    %v117 = vmax.f32 %v107, 0.0
    %v118 = vmax.f32 %v116, 0.0
    %v119 = vadd.f32 %v93, %v117
    %v120 = vadd.f32 %v94, %v118
    %v121 = vmul.f32 %v68, %v119
    %v122 = vmul.f32 %v69, %v119
    %v123 = vmul.f32 %v68, %v120
    %v124 = vmul.f32 %v69, %v120
    %v125 = vsel %vm74, %v121, 0.0
    %126 = vadd.xlane.f32.xlu0 %v125
    %v127 = vpop.xlane.xlu0 %126
    %v128 = vsel %vm74, %v122, 0.0
    %129 = vadd.xlane.f32.xlu0 %v128
    %v130 = vpop.xlane.xlu0 %129
    %v131 = vsel %vm74, %v123, 0.0
    %132 = vadd.xlane.f32.xlu0 %v131
    %v133 = vpop.xlane.xlu0 %132
    %v134 = vsel %vm74, %v124, 0.0
    %135 = vadd.xlane.f32.xlu0 %v134
    %v136 = vpop.xlane.xlu0 %135
    %v137 = vsub.f32 0.0, %v127
    %v138 = vsub.f32 0.0, %v130
    %v139 = vsub.f32 0.0, %v133
    %v140 = vsub.f32 0.0, %v136
    %v141 = vmul.f32 %v137, 1.442695
    %v142 = vpow.pop %v141
    %v143 = vmul.f32 %v138, 1.442695
    %v144 = vpow.pop %v143
    %v145 = vmul.f32 %v139, 1.442695
    %v146 = vpow.pop %v145
    %v147 = vmul.f32 %v140, 1.442695
    %v148 = vpow.pop %v147
    %v149 = vadd.f32 %v142, 1.0
    %v150 = vadd.f32 %v144, 1.0
    %v151 = vadd.f32 %v146, 1.0
    %v152 = vadd.f32 %v148, 1.0
    %v153 = vrcp.pop %v149
    %v154 = vmul.f32 1.0, %v153
    %v155 = vrcp.pop %v150
    %v156 = vmul.f32 1.0, %v155
    %v157 = vrcp.pop %v151
    %v158 = vmul.f32 1.0, %v157
    %v159 = vrcp.pop %v152
    %v160 = vmul.f32 1.0, %v159
    %v161 = vmul.f32 %v30, %v154
    %v162 = vmul.f32 %v31, %v154
    %v163 = vmul.f32 %v32, %v156
    %v164 = vmul.f32 %v33, %v156
    %v165 = vmul.f32 %v34, %v158
    %v166 = vmul.f32 %v35, %v158
    %v167 = vmul.f32 %v36, %v160
    %v168 = vmul.f32 %v37, %v160
    %v169 = vadd.f32 %v161, %v163
    %v170 = vrot.slane %v169, 4
    %v171 = vadd.f32 %v169, %v170
    %v172 = vrot.slane %v171, 2
    %v173 = vadd.f32 %v171, %v172
    %v174 = vrot.slane %v173, 1
    %v175 = vadd.f32 %v173, %v174
    %v176 = vadd.f32 %v162, %v164
    %v177 = vrot.slane %v176, 4
    %v178 = vadd.f32 %v176, %v177
    %v179 = vrot.slane %v178, 2
    %v180 = vadd.f32 %v178, %v179
    %v181 = vrot.slane %v180, 1
    %v182 = vadd.f32 %v180, %v181
    %v183 = vadd.f32 %v165, %v167
    %v184 = vrot.slane %v183, 4
    %v185 = vadd.f32 %v183, %v184
    %v186 = vrot.slane %v185, 2
    %v187 = vadd.f32 %v185, %v186
    %v188 = vrot.slane %v187, 1
    %v189 = vadd.f32 %v187, %v188
    %v190 = vadd.f32 %v166, %v168
    %v191 = vrot.slane %v190, 4
    %v192 = vadd.f32 %v190, %v191
    %v193 = vrot.slane %v192, 2
    %v194 = vadd.f32 %v192, %v193
    %v195 = vrot.slane %v194, 1
    %v196 = vadd.f32 %v194, %v195
    %v197 = vmul.f32 %v175, 0.0625
    %v198 = vmul.f32 %v182, 0.0625
    %v199 = vmul.f32 %v189, 0.0625
    %v200 = vmul.f32 %v196, 0.0625
    %v201 = vmax.f32 %v161, %v163
    %v202 = vrot.slane %v201, 4
    %v203 = vmax.f32 %v201, %v202
    %v204 = vrot.slane %v203, 2
    %v205 = vmax.f32 %v203, %v204
    %v206 = vrot.slane %v205, 1
    %v207 = vmax.f32 %v205, %v206
    %v208 = vmax.f32 %v162, %v164
    %v209 = vrot.slane %v208, 4
    %v210 = vmax.f32 %v208, %v209
    %v211 = vrot.slane %v210, 2
    %v212 = vmax.f32 %v210, %v211
    %v213 = vrot.slane %v212, 1
    %v214 = vmax.f32 %v212, %v213
    %v215 = vmax.f32 %v165, %v167
    %v216 = vrot.slane %v215, 4
    %v217 = vmax.f32 %v215, %v216
    %v218 = vrot.slane %v217, 2
    %v219 = vmax.f32 %v217, %v218
    %v220 = vrot.slane %v219, 1
    %v221 = vmax.f32 %v219, %v220
    %v222 = vmax.f32 %v166, %v168
    %v223 = vrot.slane %v222, 4
    %v224 = vmax.f32 %v222, %v223
    %v225 = vrot.slane %v224, 2
    %v226 = vmax.f32 %v224, %v225
    %v227 = vrot.slane %v226, 1
    %v228 = vmax.f32 %v226, %v227
    %v229 = vlaneseq
    %vm230 = vcmp.ge.s32.totalorder %v229, 0
    %vm231 = vcmp.lt.s32.totalorder %v229, 358
    %vm232 = vmand %vm230, %vm231
    %233 = vst.msk [vmem:[#allocation2] sm:$0x7] %vm232, 0.0
    %234 = vst.msk [vmem:[#allocation2 + $0x3] sm:$0x7] %vm232, 0.0
    %235 = vst.msk [vmem:[#allocation3] sm:$0x7] %vm232, 0.0
    %236 = vst.msk [vmem:[#allocation3 + $0x3] sm:$0x7] %vm232, 0.0
    %v241 = vcombine.low %v197, %v198
    %v243 = vunpack.c.l.s4 1966171168
    %v244 = vunpack.c.0.s8 %v243
    %v245 = vlaneseq
    %v246 = vshrl.u32 %v245, 7
    %v247 = vsub.s32 %v244, %v246
    %v248 = vrot.slane %v241, %v247
    %v250 = vunpack.c.l.s4 1966171168
    %v251 = vunpack.c.0.s8 %v250
    %v252 = vlaneseq
    %v253 = vshrl.u32 %v252, 7
    %v254 = vsub.s32 %v251, %v253
    %v255 = vrot.slane %v248, %v254
    %v256 = vcombine.low %v199, %v200
    %v258 = vunpack.c.l.s4 1966171168
    %v259 = vunpack.c.0.s8 %v258
    %v260 = vlaneseq
    %v261 = vshrl.u32 %v260, 7
    %v262 = vsub.s32 %v259, %v261
    %v263 = vrot.slane %v256, %v262
    %v265 = vunpack.c.l.s4 1966171168
    %v266 = vunpack.c.0.s8 %v265
    %v267 = vlaneseq
    %v268 = vshrl.u32 %v267, 7
    %v269 = vsub.s32 %v266, %v268
    %v270 = vrot.slane %v263, %v269
    %271 = vrot.lane.b32.xlu0 %v255, 51
    %v272 = vpop.permute.xlu0 %271
    %273 = vrot.lane.b32.xlu0 %v270, 51
    %v274 = vpop.permute.xlu0 %273
    %v275 = vrot.slane %v272, 7
    %v276 = vrot.slane %v274, 7
    %vm277 = vcmask 416768
    %v278 = vsel %vm277, %v275, %v272
    %v279 = vsel %vm277, %v276, %v274
    %vm282 = vcmp.ge.s32.totalorder %v229, 51
    %vm283 = vcmp.lt.s32.totalorder %v229, 307
    %vm284 = vmand %vm282, %vm283
    %285 = vst.msk [vmem:[#allocation2] sm:$0x7] %vm284, %v278
    %286 = vst.msk [vmem:[#allocation2 + $0x3] sm:$0x7] %vm284, %v279
    %v291 = vcombine.low %v207, %v214
    %v293 = vunpack.c.l.s4 1966171168
    %v294 = vunpack.c.0.s8 %v293
    %v295 = vlaneseq
    %v296 = vshrl.u32 %v295, 7
    %v297 = vsub.s32 %v294, %v296
    %v298 = vrot.slane %v291, %v297
    %v300 = vunpack.c.l.s4 1966171168
    %v301 = vunpack.c.0.s8 %v300
    %v302 = vlaneseq
    %v303 = vshrl.u32 %v302, 7
    %v304 = vsub.s32 %v301, %v303
    %v305 = vrot.slane %v298, %v304
    %v306 = vcombine.low %v221, %v228
    %v308 = vunpack.c.l.s4 1966171168
    %v309 = vunpack.c.0.s8 %v308
    %v310 = vlaneseq
    %v311 = vshrl.u32 %v310, 7
    %v312 = vsub.s32 %v309, %v311
    %v313 = vrot.slane %v306, %v312
    %v315 = vunpack.c.l.s4 1966171168
    %v316 = vunpack.c.0.s8 %v315
    %v317 = vlaneseq
    %v318 = vshrl.u32 %v317, 7
    %v319 = vsub.s32 %v316, %v318
    %v320 = vrot.slane %v313, %v319
    %321 = vrot.lane.b32.xlu0 %v305, 51
    %v322 = vpop.permute.xlu0 %321
    %323 = vrot.lane.b32.xlu0 %v320, 51
    %v324 = vpop.permute.xlu0 %323
    %v325 = vrot.slane %v322, 7
    %v326 = vrot.slane %v324, 7
    %v327 = vsel %vm277, %v325, %v322
    %v328 = vsel %vm277, %v326, %v324
    %331 = vst.msk [vmem:[#allocation3] sm:$0x7] %vm284, %v327
    %332 = vst.msk [vmem:[#allocation3 + $0x3] sm:$0x7] %vm284, %v328
    %v333 = vlaneseq
    %v334 = vand.u32 %v333, 127
    %v335 = vadd.s32 %v334, 128
    %vm336 = vcmp.lt.s32.totalorder %v334, 0
    %v337 = vsub.s32 0, %v334
    %v338 = vsel %vm336, %v337, %v334
    %v339 = vshrl.u32 %v338, 4
    %v340 = vand.u32 %v338, 15
    %v341 = vsub.s32 0, %v340
    %v342 = vsel %vm336, %v341, %v340
    %vm343 = vcmp.lt.s32.totalorder %v335, 0
    %v344 = vsub.s32 0, %v335
    %v345 = vsel %vm343, %v344, %v335
    %v346 = vshrl.u32 %v345, 4
    %v347 = vand.u32 %v345, 15
    %v348 = vsub.s32 0, %v347
    %v349 = vsel %vm343, %v348, %v347
    %vm350 = vcmp.ne.s32.totalorder %v342, 0
    %vm351 = vcmp.ne.s32.totalorder %v349, 0
    %vm352 = vcmp.lt.s32.totalorder %v342, 0
    %vm353 = vcmp.lt.s32.totalorder %v349, 0
    %vm354 = vmand %vm352, %vm350
    %vm355 = vmand %vm353, %vm351
    %v356 = vadd.s32 %v342, 16
    %v357 = vadd.s32 %v349, 16
    %v358 = vsel %vm354, %v356, %v342
    %v359 = vsel %vm355, %v357, %v349
    %vm360 = vcmp.ge.s32.totalorder %v358, 3
    %vm361 = vcmp.ge.s32.totalorder %v359, 3
    %vm362 = vcmp.lt.s32.totalorder %v358, 19
    %vm363 = vcmp.lt.s32.totalorder %v359, 19
    %vm364 = vmand %vm360, %vm362
    %vm365 = vmand %vm361, %vm363
    %s366 = sld [smem:[#allocation4]]
    %s367 = sld [smem:[#allocation4 + $0x31]]
    %v368 = vld [vmem:[#allocation2] sm:$0x3]
    %v369 = vld [vmem:[#allocation2 + $0x3] sm:$0x3]
    %v370 = vstv %s366
    %v371 = vmul.f32 %v370, %v368
    %v372 = vmul.f32 %v370, %v369
    %v373 = vld [vmem:[#allocation3] sm:$0x3]
    %v374 = vld [vmem:[#allocation3 + $0x3] sm:$0x3]
    %v375 = vstv %s367
    %v376 = vmul.f32 %v375, %v373
    %v377 = vmul.f32 %v375, %v374
    %v378 = vadd.f32 %v371, %v376
    %v379 = vadd.f32 %v372, %v377
    %v380 = vadd.f32 %v378, 0.0
    %v381 = vadd.f32 %v379, 0.0
    %s382 = sld [smem:[#allocation4 + $0x7]]
    %s383 = sld [smem:[#allocation4 + $0x38]]
    %v384 = vld [vmem:[#allocation2] sm:$0x7]
    %v385 = vld [vmem:[#allocation2 + $0x3] sm:$0x7]
    %v386 = vstv %s382
    %v387 = vmul.f32 %v386, %v384
    %v388 = vmul.f32 %v386, %v385
    %v389 = vld [vmem:[#allocation3] sm:$0x7]
    %v390 = vld [vmem:[#allocation3 + $0x3] sm:$0x7]
    %v391 = vstv %s383
    %v392 = vmul.f32 %v391, %v389
    %v393 = vmul.f32 %v391, %v390
    %v394 = vadd.f32 %v387, %v392
    %v395 = vadd.f32 %v388, %v393
    %398 = vrot.lane.b32.xlu0 %v394, 112
    %v399 = vpop.permute.xlu0 %398
    %400 = vrot.lane.b32.xlu0 %v395, 112
    %v401 = vpop.permute.xlu0 %400
    %v402 = vrot.slane %v399, 1
    %v403 = vrot.slane %v401, 1
    %vm404 = vcmask 916480
    %v405 = vsel %vm404, %v399, %v402
    %v406 = vsel %vm404, %v401, %v403
    %v409 = vadd.f32 %v380, %v405
    %v410 = vadd.f32 %v381, %v406
    %s411 = sld [smem:[#allocation4 + $0xe]]
    %s412 = sld [smem:[#allocation4 + $0x3f]]
    %v413 = vstv %s411
    %v414 = vmul.f32 %v413, %v384
    %v415 = vmul.f32 %v413, %v385
    %v416 = vstv %s412
    %v417 = vmul.f32 %v416, %v389
    %v418 = vmul.f32 %v416, %v390
    %v419 = vadd.f32 %v414, %v417
    %v420 = vadd.f32 %v415, %v418
    %423 = vrot.lane.b32.xlu0 %v419, 96
    %v424 = vpop.permute.xlu0 %423
    %425 = vrot.lane.b32.xlu0 %v420, 96
    %v426 = vpop.permute.xlu0 %425
    %v427 = vrot.slane %v424, 1
    %v428 = vrot.slane %v426, 1
    %vm429 = vcmask 785408
    %v430 = vsel %vm429, %v424, %v427
    %v431 = vsel %vm429, %v426, %v428
    %v434 = vadd.f32 %v409, %v430
    %v435 = vadd.f32 %v410, %v431
    %s436 = sld [smem:[#allocation4 + $0x15]]
    %s437 = sld [smem:[#allocation4 + $0x46]]
    %v438 = vstv %s436
    %v439 = vmul.f32 %v438, %v384
    %v440 = vmul.f32 %v438, %v385
    %v441 = vstv %s437
    %v442 = vmul.f32 %v441, %v389
    %v443 = vmul.f32 %v441, %v390
    %v444 = vadd.f32 %v439, %v442
    %v445 = vadd.f32 %v440, %v443
    %448 = vrot.lane.b32.xlu0 %v444, 80
    %v449 = vpop.permute.xlu0 %448
    %450 = vrot.lane.b32.xlu0 %v445, 80
    %v451 = vpop.permute.xlu0 %450
    %v452 = vrot.slane %v449, 1
    %v453 = vrot.slane %v451, 1
    %vm454 = vcmask 654336
    %v455 = vsel %vm454, %v449, %v452
    %v456 = vsel %vm454, %v451, %v453
    %v459 = vadd.f32 %v434, %v455
    %v460 = vadd.f32 %v435, %v456
    %s461 = sld [smem:[#allocation4 + $0x1c]]
    %s462 = sld [smem:[#allocation4 + $0x4d]]
    %v463 = vstv %s461
    %v464 = vmul.f32 %v463, %v384
    %v465 = vmul.f32 %v463, %v385
    %v466 = vstv %s462
    %v467 = vmul.f32 %v466, %v389
    %v468 = vmul.f32 %v466, %v390
    %v469 = vadd.f32 %v464, %v467
    %v470 = vadd.f32 %v465, %v468
    %473 = vrot.lane.b32.xlu0 %v469, 64
    %v474 = vpop.permute.xlu0 %473
    %475 = vrot.lane.b32.xlu0 %v470, 64
    %v476 = vpop.permute.xlu0 %475
    %v477 = vrot.slane %v474, 1
    %v478 = vrot.slane %v476, 1
    %vm479 = vcmask 523264
    %v480 = vsel %vm479, %v474, %v477
    %v481 = vsel %vm479, %v476, %v478
    %v484 = vadd.f32 %v459, %v480
    %v485 = vadd.f32 %v460, %v481
    %s486 = sld [smem:[#allocation4 + $0x23]]
    %s487 = sld [smem:[#allocation4 + $0x54]]
    %v488 = vstv %s486
    %v489 = vmul.f32 %v488, %v384
    %v490 = vmul.f32 %v488, %v385
    %v491 = vstv %s487
    %v492 = vmul.f32 %v491, %v389
    %v493 = vmul.f32 %v491, %v390
    %v494 = vadd.f32 %v489, %v492
    %v495 = vadd.f32 %v490, %v493
    %498 = vrot.lane.b32.xlu0 %v494, 48
    %v499 = vpop.permute.xlu0 %498
    %500 = vrot.lane.b32.xlu0 %v495, 48
    %v501 = vpop.permute.xlu0 %500
    %v502 = vrot.slane %v499, 1
    %v503 = vrot.slane %v501, 1
    %vm504 = vcmask 392192
    %v505 = vsel %vm504, %v499, %v502
    %v506 = vsel %vm504, %v501, %v503
    %v509 = vadd.f32 %v484, %v505
    %v510 = vadd.f32 %v485, %v506
    %s511 = sld [smem:[#allocation4 + $0x2a]]
    %s512 = sld [smem:[#allocation4 + $0x5b]]
    %v513 = vstv %s511
    %v514 = vmul.f32 %v513, %v384
    %v515 = vmul.f32 %v513, %v385
    %v516 = vstv %s512
    %v517 = vmul.f32 %v516, %v389
    %v518 = vmul.f32 %v516, %v390
    %v519 = vadd.f32 %v514, %v517
    %v520 = vadd.f32 %v515, %v518
    %523 = vrot.lane.b32.xlu0 %v519, 32
    %v524 = vpop.permute.xlu0 %523
    %525 = vrot.lane.b32.xlu0 %v520, 32
    %v526 = vpop.permute.xlu0 %525
    %v527 = vrot.slane %v524, 1
    %v528 = vrot.slane %v526, 1
    %vm529 = vcmask 261120
    %v530 = vsel %vm529, %v524, %v527
    %v531 = vsel %vm529, %v526, %v528
    %v534 = vadd.f32 %v509, %v530
    %v535 = vadd.f32 %v510, %v531
    %v536 = vsel %vm364, 1, 0
    %v537 = vsel %vm365, 1, 0
    %vm538 = vcmp.eq.s32.totalorder %v536, 1
    %vm539 = vcmp.eq.s32.totalorder %v537, 1
    %v542 = vlaneseq
    %v543 = vshrl.u32 %v542, 7
    %v544 = vsub.s32 0, %v543
    %v545 = vrot.slane %v534, %v544
    %v546 = vlaneseq
    %v547 = vshrl.u32 %v546, 7
    %v548 = vsub.s32 1, %v547
    %v549 = vrot.slane %v534, %v548
    %v550 = vlaneseq
    %v551 = vshrl.u32 %v550, 7
    %v552 = vsub.s32 0, %v551
    %v553 = vrot.slane %v535, %v552
    %v554 = vlaneseq
    %v555 = vshrl.u32 %v554, 7
    %v556 = vsub.s32 1, %v555
    %v557 = vrot.slane %v535, %v556
    %v562 = vsel %vm538, %v545, 0.0
    %v563 = vsel %vm539, %v549, 0.0
    %v564 = vsel %vm538, %v553, 0.0
    %v565 = vsel %vm539, %v557, 0.0
    %v566 = vadd.f32 %v562, 0.0
    %v567 = vadd.f32 %v563, 0.0
    %v568 = vadd.f32 %v564, 0.0
    %v569 = vadd.f32 %v565, 0.0
    %vm570 = vcmp.ge.s32.totalorder %v358, 2
    %vm571 = vcmp.ge.s32.totalorder %v359, 2
    %vm572 = vcmp.lt.s32.totalorder %v358, 18
    %vm573 = vcmp.lt.s32.totalorder %v359, 18
    %vm574 = vmand %vm570, %vm572
    %vm575 = vmand %vm571, %vm573
    %s576 = sld [smem:[#allocation4 + $0x1]]
    %s577 = sld [smem:[#allocation4 + $0x32]]
    %v578 = vstv %s576
    %v579 = vmul.f32 %v578, %v384
    %v580 = vmul.f32 %v578, %v385
    %v581 = vstv %s577
    %v582 = vmul.f32 %v581, %v389
    %v583 = vmul.f32 %v581, %v390
    %v584 = vadd.f32 %v579, %v582
    %v585 = vadd.f32 %v580, %v583
    %v586 = vadd.f32 %v584, 0.0
    %v587 = vadd.f32 %v585, 0.0
    %s588 = sld [smem:[#allocation4 + $0x8]]
    %s589 = sld [smem:[#allocation4 + $0x39]]
    %v590 = vstv %s588
    %v591 = vmul.f32 %v590, %v384
    %v592 = vmul.f32 %v590, %v385
    %v593 = vstv %s589
    %v594 = vmul.f32 %v593, %v389
    %v595 = vmul.f32 %v593, %v390
    %v596 = vadd.f32 %v591, %v594
    %v597 = vadd.f32 %v592, %v595
    %600 = vrot.lane.b32.xlu0 %v596, 112
    %v601 = vpop.permute.xlu0 %600
    %602 = vrot.lane.b32.xlu0 %v597, 112
    %v603 = vpop.permute.xlu0 %602
    %v604 = vrot.slane %v601, 1
    %v605 = vrot.slane %v603, 1
    %v606 = vsel %vm404, %v601, %v604
    %v607 = vsel %vm404, %v603, %v605
    %v610 = vadd.f32 %v586, %v606
    %v611 = vadd.f32 %v587, %v607
    %s612 = sld [smem:[#allocation4 + $0xf]]
    %s613 = sld [smem:[#allocation4 + $0x40]]
    %v614 = vstv %s612
    %v615 = vmul.f32 %v614, %v384
    %v616 = vmul.f32 %v614, %v385
    %v617 = vstv %s613
    %v618 = vmul.f32 %v617, %v389
    %v619 = vmul.f32 %v617, %v390
    %v620 = vadd.f32 %v615, %v618
    %v621 = vadd.f32 %v616, %v619
    %624 = vrot.lane.b32.xlu0 %v620, 96
    %v625 = vpop.permute.xlu0 %624
    %626 = vrot.lane.b32.xlu0 %v621, 96
    %v627 = vpop.permute.xlu0 %626
    %v628 = vrot.slane %v625, 1
    %v629 = vrot.slane %v627, 1
    %v630 = vsel %vm429, %v625, %v628
    %v631 = vsel %vm429, %v627, %v629
    %v634 = vadd.f32 %v610, %v630
    %v635 = vadd.f32 %v611, %v631
    %s636 = sld [smem:[#allocation4 + $0x16]]
    %s637 = sld [smem:[#allocation4 + $0x47]]
    %v638 = vstv %s636
    %v639 = vmul.f32 %v638, %v384
    %v640 = vmul.f32 %v638, %v385
    %v641 = vstv %s637
    %v642 = vmul.f32 %v641, %v389
    %v643 = vmul.f32 %v641, %v390
    %v644 = vadd.f32 %v639, %v642
    %v645 = vadd.f32 %v640, %v643
    %648 = vrot.lane.b32.xlu0 %v644, 80
    %v649 = vpop.permute.xlu0 %648
    %650 = vrot.lane.b32.xlu0 %v645, 80
    %v651 = vpop.permute.xlu0 %650
    %v652 = vrot.slane %v649, 1
    %v653 = vrot.slane %v651, 1
    %v654 = vsel %vm454, %v649, %v652
    %v655 = vsel %vm454, %v651, %v653
    %v658 = vadd.f32 %v634, %v654
    %v659 = vadd.f32 %v635, %v655
    %s660 = sld [smem:[#allocation4 + $0x1d]]
    %s661 = sld [smem:[#allocation4 + $0x4e]]
    %v662 = vstv %s660
    %v663 = vmul.f32 %v662, %v384
    %v664 = vmul.f32 %v662, %v385
    %v665 = vstv %s661
    %v666 = vmul.f32 %v665, %v389
    %v667 = vmul.f32 %v665, %v390
    %v668 = vadd.f32 %v663, %v666
    %v669 = vadd.f32 %v664, %v667
    %672 = vrot.lane.b32.xlu0 %v668, 64
    %v673 = vpop.permute.xlu0 %672
    %674 = vrot.lane.b32.xlu0 %v669, 64
    %v675 = vpop.permute.xlu0 %674
    %v676 = vrot.slane %v673, 1
    %v677 = vrot.slane %v675, 1
    %v678 = vsel %vm479, %v673, %v676
    %v679 = vsel %vm479, %v675, %v677
    %v682 = vadd.f32 %v658, %v678
    %v683 = vadd.f32 %v659, %v679
    %s684 = sld [smem:[#allocation4 + $0x24]]
    %s685 = sld [smem:[#allocation4 + $0x55]]
    %v686 = vstv %s684
    %v687 = vmul.f32 %v686, %v384
    %v688 = vmul.f32 %v686, %v385
    %v689 = vstv %s685
    %v690 = vmul.f32 %v689, %v389
    %v691 = vmul.f32 %v689, %v390
    %v692 = vadd.f32 %v687, %v690
    %v693 = vadd.f32 %v688, %v691
    %696 = vrot.lane.b32.xlu0 %v692, 48
    %v697 = vpop.permute.xlu0 %696
    %698 = vrot.lane.b32.xlu0 %v693, 48
    %v699 = vpop.permute.xlu0 %698
    %v700 = vrot.slane %v697, 1
    %v701 = vrot.slane %v699, 1
    %v702 = vsel %vm504, %v697, %v700
    %v703 = vsel %vm504, %v699, %v701
    %v706 = vadd.f32 %v682, %v702
    %v707 = vadd.f32 %v683, %v703
    %s708 = sld [smem:[#allocation4 + $0x2b]]
    %s709 = sld [smem:[#allocation4 + $0x5c]]
    %v710 = vstv %s708
    %v711 = vmul.f32 %v710, %v384
    %v712 = vmul.f32 %v710, %v385
    %v713 = vstv %s709
    %v714 = vmul.f32 %v713, %v389
    %v715 = vmul.f32 %v713, %v390
    %v716 = vadd.f32 %v711, %v714
    %v717 = vadd.f32 %v712, %v715
    %720 = vrot.lane.b32.xlu0 %v716, 32
    %v721 = vpop.permute.xlu0 %720
    %722 = vrot.lane.b32.xlu0 %v717, 32
    %v723 = vpop.permute.xlu0 %722
    %v724 = vrot.slane %v721, 1
    %v725 = vrot.slane %v723, 1
    %v726 = vsel %vm529, %v721, %v724
    %v727 = vsel %vm529, %v723, %v725
    %v730 = vadd.f32 %v706, %v726
    %v731 = vadd.f32 %v707, %v727
    %v732 = vsel %vm574, 1, 0
    %v733 = vsel %vm575, 1, 0
    %vm734 = vcmp.eq.s32.totalorder %v732, 1
    %vm735 = vcmp.eq.s32.totalorder %v733, 1
    %v738 = vlaneseq
    %v739 = vshrl.u32 %v738, 7
    %v740 = vsub.s32 0, %v739
    %v741 = vrot.slane %v730, %v740
    %v742 = vlaneseq
    %v743 = vshrl.u32 %v742, 7
    %v744 = vsub.s32 1, %v743
    %v745 = vrot.slane %v730, %v744
    %v746 = vlaneseq
    %v747 = vshrl.u32 %v746, 7
    %v748 = vsub.s32 2, %v747
    %v749 = vrot.slane %v730, %v748
    %v750 = vlaneseq
    %v751 = vshrl.u32 %v750, 7
    %v752 = vsub.s32 0, %v751
    %v753 = vrot.slane %v731, %v752
    %v754 = vlaneseq
    %v755 = vshrl.u32 %v754, 7
    %v756 = vsub.s32 1, %v755
    %v757 = vrot.slane %v731, %v756
    %v758 = vlaneseq
    %v759 = vshrl.u32 %v758, 7
    %v760 = vsub.s32 2, %v759
    %v761 = vrot.slane %v731, %v760
    %762 = vrot.lane.b32.xlu0 %v741, 127
    %v763 = vpop.permute.xlu0 %762
    %764 = vrot.lane.b32.xlu0 %v745, 127
    %v765 = vpop.permute.xlu0 %764
    %766 = vrot.lane.b32.xlu0 %v749, 127
    %v767 = vpop.permute.xlu0 %766
    %768 = vrot.lane.b32.xlu0 %v753, 127
    %v769 = vpop.permute.xlu0 %768
    %770 = vrot.lane.b32.xlu0 %v757, 127
    %v771 = vpop.permute.xlu0 %770
    %772 = vrot.lane.b32.xlu0 %v761, 127
    %v773 = vpop.permute.xlu0 %772
    %vm774 = vcmask 1039360
    %v775 = vsel %vm774, %v763, %v765
    %v776 = vsel %vm774, %v765, %v767
    %v777 = vsel %vm774, %v769, %v771
    %v778 = vsel %vm774, %v771, %v773
    %v783 = vsel %vm734, %v775, 0.0
    %v784 = vsel %vm735, %v776, 0.0
    %v785 = vsel %vm734, %v777, 0.0
    %v786 = vsel %vm735, %v778, 0.0
    %v787 = vadd.f32 %v566, %v783
    %v788 = vadd.f32 %v567, %v784
    %v789 = vadd.f32 %v568, %v785
    %v790 = vadd.f32 %v569, %v786
    %vm791 = vcmp.ge.s32.totalorder %v358, 1
    %vm792 = vcmp.ge.s32.totalorder %v359, 1
    %vm793 = vcmp.lt.s32.totalorder %v358, 17
    %vm794 = vcmp.lt.s32.totalorder %v359, 17
    %vm795 = vmand %vm791, %vm793
    %vm796 = vmand %vm792, %vm794
    %s797 = sld [smem:[#allocation4 + $0x2]]
    %s798 = sld [smem:[#allocation4 + $0x33]]
    %v799 = vstv %s797
    %v800 = vmul.f32 %v799, %v384
    %v801 = vmul.f32 %v799, %v385
    %v802 = vstv %s798
    %v803 = vmul.f32 %v802, %v389
    %v804 = vmul.f32 %v802, %v390
    %v805 = vadd.f32 %v800, %v803
    %v806 = vadd.f32 %v801, %v804
    %v807 = vadd.f32 %v805, 0.0
    %v808 = vadd.f32 %v806, 0.0
    %s809 = sld [smem:[#allocation4 + $0x9]]
    %s810 = sld [smem:[#allocation4 + $0x3a]]
    %v811 = vstv %s809
    %v812 = vmul.f32 %v811, %v384
    %v813 = vmul.f32 %v811, %v385
    %v814 = vstv %s810
    %v815 = vmul.f32 %v814, %v389
    %v816 = vmul.f32 %v814, %v390
    %v817 = vadd.f32 %v812, %v815
    %v818 = vadd.f32 %v813, %v816
    %821 = vrot.lane.b32.xlu0 %v817, 112
    %v822 = vpop.permute.xlu0 %821
    %823 = vrot.lane.b32.xlu0 %v818, 112
    %v824 = vpop.permute.xlu0 %823
    %v825 = vrot.slane %v822, 1
    %v826 = vrot.slane %v824, 1
    %v827 = vsel %vm404, %v822, %v825
    %v828 = vsel %vm404, %v824, %v826
    %v831 = vadd.f32 %v807, %v827
    %v832 = vadd.f32 %v808, %v828
    %s833 = sld [smem:[#allocation4 + $0x10]]
    %s834 = sld [smem:[#allocation4 + $0x41]]
    %v835 = vstv %s833
    %v836 = vmul.f32 %v835, %v384
    %v837 = vmul.f32 %v835, %v385
    %v838 = vstv %s834
    %v839 = vmul.f32 %v838, %v389
    %v840 = vmul.f32 %v838, %v390
    %v841 = vadd.f32 %v836, %v839
    %v842 = vadd.f32 %v837, %v840
    %845 = vrot.lane.b32.xlu0 %v841, 96
    %v846 = vpop.permute.xlu0 %845
    %847 = vrot.lane.b32.xlu0 %v842, 96
    %v848 = vpop.permute.xlu0 %847
    %v849 = vrot.slane %v846, 1
    %v850 = vrot.slane %v848, 1
    %v851 = vsel %vm429, %v846, %v849
    %v852 = vsel %vm429, %v848, %v850
    %v855 = vadd.f32 %v831, %v851
    %v856 = vadd.f32 %v832, %v852
    %s857 = sld [smem:[#allocation4 + $0x17]]
    %s858 = sld [smem:[#allocation4 + $0x48]]
    %v859 = vstv %s857
    %v860 = vmul.f32 %v859, %v384
    %v861 = vmul.f32 %v859, %v385
    %v862 = vstv %s858
    %v863 = vmul.f32 %v862, %v389
    %v864 = vmul.f32 %v862, %v390
    %v865 = vadd.f32 %v860, %v863
    %v866 = vadd.f32 %v861, %v864
    %869 = vrot.lane.b32.xlu0 %v865, 80
    %v870 = vpop.permute.xlu0 %869
    %871 = vrot.lane.b32.xlu0 %v866, 80
    %v872 = vpop.permute.xlu0 %871
    %v873 = vrot.slane %v870, 1
    %v874 = vrot.slane %v872, 1
    %v875 = vsel %vm454, %v870, %v873
    %v876 = vsel %vm454, %v872, %v874
    %v879 = vadd.f32 %v855, %v875
    %v880 = vadd.f32 %v856, %v876
    %s881 = sld [smem:[#allocation4 + $0x1e]]
    %s882 = sld [smem:[#allocation4 + $0x4f]]
    %v883 = vstv %s881
    %v884 = vmul.f32 %v883, %v384
    %v885 = vmul.f32 %v883, %v385
    %v886 = vstv %s882
    %v887 = vmul.f32 %v886, %v389
    %v888 = vmul.f32 %v886, %v390
    %v889 = vadd.f32 %v884, %v887
    %v890 = vadd.f32 %v885, %v888
    %893 = vrot.lane.b32.xlu0 %v889, 64
    %v894 = vpop.permute.xlu0 %893
    %895 = vrot.lane.b32.xlu0 %v890, 64
    %v896 = vpop.permute.xlu0 %895
    %v897 = vrot.slane %v894, 1
    %v898 = vrot.slane %v896, 1
    %v899 = vsel %vm479, %v894, %v897
    %v900 = vsel %vm479, %v896, %v898
    %v903 = vadd.f32 %v879, %v899
    %v904 = vadd.f32 %v880, %v900
    %s905 = sld [smem:[#allocation4 + $0x25]]
    %s906 = sld [smem:[#allocation4 + $0x56]]
    %v907 = vstv %s905
    %v908 = vmul.f32 %v907, %v384
    %v909 = vmul.f32 %v907, %v385
    %v910 = vstv %s906
    %v911 = vmul.f32 %v910, %v389
    %v912 = vmul.f32 %v910, %v390
    %v913 = vadd.f32 %v908, %v911
    %v914 = vadd.f32 %v909, %v912
    %917 = vrot.lane.b32.xlu0 %v913, 48
    %v918 = vpop.permute.xlu0 %917
    %919 = vrot.lane.b32.xlu0 %v914, 48
    %v920 = vpop.permute.xlu0 %919
    %v921 = vrot.slane %v918, 1
    %v922 = vrot.slane %v920, 1
    %v923 = vsel %vm504, %v918, %v921
    %v924 = vsel %vm504, %v920, %v922
    %v927 = vadd.f32 %v903, %v923
    %v928 = vadd.f32 %v904, %v924
    %s929 = sld [smem:[#allocation4 + $0x2c]]
    %s930 = sld [smem:[#allocation4 + $0x5d]]
    %v931 = vstv %s929
    %v932 = vmul.f32 %v931, %v384
    %v933 = vmul.f32 %v931, %v385
    %v934 = vstv %s930
    %v935 = vmul.f32 %v934, %v389
    %v936 = vmul.f32 %v934, %v390
    %v937 = vadd.f32 %v932, %v935
    %v938 = vadd.f32 %v933, %v936
    %941 = vrot.lane.b32.xlu0 %v937, 32
    %v942 = vpop.permute.xlu0 %941
    %943 = vrot.lane.b32.xlu0 %v938, 32
    %v944 = vpop.permute.xlu0 %943
    %v945 = vrot.slane %v942, 1
    %v946 = vrot.slane %v944, 1
    %v947 = vsel %vm529, %v942, %v945
    %v948 = vsel %vm529, %v944, %v946
    %v951 = vadd.f32 %v927, %v947
    %v952 = vadd.f32 %v928, %v948
    %v953 = vsel %vm795, 1, 0
    %v954 = vsel %vm796, 1, 0
    %vm955 = vcmp.eq.s32.totalorder %v953, 1
    %vm956 = vcmp.eq.s32.totalorder %v954, 1
    %v959 = vlaneseq
    %v960 = vshrl.u32 %v959, 7
    %v961 = vsub.s32 0, %v960
    %v962 = vrot.slane %v951, %v961
    %v963 = vlaneseq
    %v964 = vshrl.u32 %v963, 7
    %v965 = vsub.s32 1, %v964
    %v966 = vrot.slane %v951, %v965
    %v967 = vlaneseq
    %v968 = vshrl.u32 %v967, 7
    %v969 = vsub.s32 2, %v968
    %v970 = vrot.slane %v951, %v969
    %v971 = vlaneseq
    %v972 = vshrl.u32 %v971, 7
    %v973 = vsub.s32 0, %v972
    %v974 = vrot.slane %v952, %v973
    %v975 = vlaneseq
    %v976 = vshrl.u32 %v975, 7
    %v977 = vsub.s32 1, %v976
    %v978 = vrot.slane %v952, %v977
    %v979 = vlaneseq
    %v980 = vshrl.u32 %v979, 7
    %v981 = vsub.s32 2, %v980
    %v982 = vrot.slane %v952, %v981
    %983 = vrot.lane.b32.xlu0 %v962, 126
    %v984 = vpop.permute.xlu0 %983
    %985 = vrot.lane.b32.xlu0 %v966, 126
    %v986 = vpop.permute.xlu0 %985
    %987 = vrot.lane.b32.xlu0 %v970, 126
    %v988 = vpop.permute.xlu0 %987
    %989 = vrot.lane.b32.xlu0 %v974, 126
    %v990 = vpop.permute.xlu0 %989
    %991 = vrot.lane.b32.xlu0 %v978, 126
    %v992 = vpop.permute.xlu0 %991
    %993 = vrot.lane.b32.xlu0 %v982, 126
    %v994 = vpop.permute.xlu0 %993
    %vm995 = vcmask 1031168
    %v996 = vsel %vm995, %v984, %v986
    %v997 = vsel %vm995, %v986, %v988
    %v998 = vsel %vm995, %v990, %v992
    %v999 = vsel %vm995, %v992, %v994
    %v1004 = vsel %vm955, %v996, 0.0
    %v1005 = vsel %vm956, %v997, 0.0
    %v1006 = vsel %vm955, %v998, 0.0
    %v1007 = vsel %vm956, %v999, 0.0
    %v1008 = vadd.f32 %v787, %v1004
    %v1009 = vadd.f32 %v788, %v1005
    %v1010 = vadd.f32 %v789, %v1006
    %v1011 = vadd.f32 %v790, %v1007
    %vm1012 = vcmp.ge.s32.totalorder %v358, 0
    %vm1013 = vcmp.ge.s32.totalorder %v359, 0
    %vm1014 = vcmp.lt.s32.totalorder %v358, 16
    %vm1015 = vcmp.lt.s32.totalorder %v359, 16
    %vm1016 = vmand %vm1012, %vm1014
    %vm1017 = vmand %vm1013, %vm1015
    %s1018 = sld [smem:[#allocation4 + $0x3]]
    %s1019 = sld [smem:[#allocation4 + $0x34]]
    %v1020 = vstv %s1018
    %v1021 = vmul.f32 %v1020, %v384
    %v1022 = vmul.f32 %v1020, %v385
    %v1023 = vstv %s1019
    %v1024 = vmul.f32 %v1023, %v389
    %v1025 = vmul.f32 %v1023, %v390
    %v1026 = vadd.f32 %v1021, %v1024
    %v1027 = vadd.f32 %v1022, %v1025
    %v1028 = vadd.f32 %v1026, 0.0
    %v1029 = vadd.f32 %v1027, 0.0
    %s1030 = sld [smem:[#allocation4 + $0xa]]
    %s1031 = sld [smem:[#allocation4 + $0x3b]]
    %v1032 = vstv %s1030
    %v1033 = vmul.f32 %v1032, %v384
    %v1034 = vmul.f32 %v1032, %v385
    %v1035 = vstv %s1031
    %v1036 = vmul.f32 %v1035, %v389
    %v1037 = vmul.f32 %v1035, %v390
    %v1038 = vadd.f32 %v1033, %v1036
    %v1039 = vadd.f32 %v1034, %v1037
    %1042 = vrot.lane.b32.xlu0 %v1038, 112
    %v1043 = vpop.permute.xlu0 %1042
    %1044 = vrot.lane.b32.xlu0 %v1039, 112
    %v1045 = vpop.permute.xlu0 %1044
    %v1046 = vrot.slane %v1043, 1
    %v1047 = vrot.slane %v1045, 1
    %v1048 = vsel %vm404, %v1043, %v1046
    %v1049 = vsel %vm404, %v1045, %v1047
    %v1052 = vadd.f32 %v1028, %v1048
    %v1053 = vadd.f32 %v1029, %v1049
    %s1054 = sld [smem:[#allocation4 + $0x11]]
    %s1055 = sld [smem:[#allocation4 + $0x42]]
    %v1056 = vstv %s1054
    %v1057 = vmul.f32 %v1056, %v384
    %v1058 = vmul.f32 %v1056, %v385
    %v1059 = vstv %s1055
    %v1060 = vmul.f32 %v1059, %v389
    %v1061 = vmul.f32 %v1059, %v390
    %v1062 = vadd.f32 %v1057, %v1060
    %v1063 = vadd.f32 %v1058, %v1061
    %1066 = vrot.lane.b32.xlu0 %v1062, 96
    %v1067 = vpop.permute.xlu0 %1066
    %1068 = vrot.lane.b32.xlu0 %v1063, 96
    %v1069 = vpop.permute.xlu0 %1068
    %v1070 = vrot.slane %v1067, 1
    %v1071 = vrot.slane %v1069, 1
    %v1072 = vsel %vm429, %v1067, %v1070
    %v1073 = vsel %vm429, %v1069, %v1071
    %v1076 = vadd.f32 %v1052, %v1072
    %v1077 = vadd.f32 %v1053, %v1073
    %s1078 = sld [smem:[#allocation4 + $0x18]]
    %s1079 = sld [smem:[#allocation4 + $0x49]]
    %v1080 = vstv %s1078
    %v1081 = vmul.f32 %v1080, %v384
    %v1082 = vmul.f32 %v1080, %v385
    %v1083 = vstv %s1079
    %v1084 = vmul.f32 %v1083, %v389
    %v1085 = vmul.f32 %v1083, %v390
    %v1086 = vadd.f32 %v1081, %v1084
    %v1087 = vadd.f32 %v1082, %v1085
    %1090 = vrot.lane.b32.xlu0 %v1086, 80
    %v1091 = vpop.permute.xlu0 %1090
    %1092 = vrot.lane.b32.xlu0 %v1087, 80
    %v1093 = vpop.permute.xlu0 %1092
    %v1094 = vrot.slane %v1091, 1
    %v1095 = vrot.slane %v1093, 1
    %v1096 = vsel %vm454, %v1091, %v1094
    %v1097 = vsel %vm454, %v1093, %v1095
    %v1100 = vadd.f32 %v1076, %v1096
    %v1101 = vadd.f32 %v1077, %v1097
    %s1102 = sld [smem:[#allocation4 + $0x1f]]
    %s1103 = sld [smem:[#allocation4 + $0x50]]
    %v1104 = vstv %s1102
    %v1105 = vmul.f32 %v1104, %v384
    %v1106 = vmul.f32 %v1104, %v385
    %v1107 = vstv %s1103
    %v1108 = vmul.f32 %v1107, %v389
    %v1109 = vmul.f32 %v1107, %v390
    %v1110 = vadd.f32 %v1105, %v1108
    %v1111 = vadd.f32 %v1106, %v1109
    %1114 = vrot.lane.b32.xlu0 %v1110, 64
    %v1115 = vpop.permute.xlu0 %1114
    %1116 = vrot.lane.b32.xlu0 %v1111, 64
    %v1117 = vpop.permute.xlu0 %1116
    %v1118 = vrot.slane %v1115, 1
    %v1119 = vrot.slane %v1117, 1
    %v1120 = vsel %vm479, %v1115, %v1118
    %v1121 = vsel %vm479, %v1117, %v1119
    %v1124 = vadd.f32 %v1100, %v1120
    %v1125 = vadd.f32 %v1101, %v1121
    %s1126 = sld [smem:[#allocation4 + $0x26]]
    %s1127 = sld [smem:[#allocation4 + $0x57]]
    %v1128 = vstv %s1126
    %v1129 = vmul.f32 %v1128, %v384
    %v1130 = vmul.f32 %v1128, %v385
    %v1131 = vstv %s1127
    %v1132 = vmul.f32 %v1131, %v389
    %v1133 = vmul.f32 %v1131, %v390
    %v1134 = vadd.f32 %v1129, %v1132
    %v1135 = vadd.f32 %v1130, %v1133
    %1138 = vrot.lane.b32.xlu0 %v1134, 48
    %v1139 = vpop.permute.xlu0 %1138
    %1140 = vrot.lane.b32.xlu0 %v1135, 48
    %v1141 = vpop.permute.xlu0 %1140
    %v1142 = vrot.slane %v1139, 1
    %v1143 = vrot.slane %v1141, 1
    %v1144 = vsel %vm504, %v1139, %v1142
    %v1145 = vsel %vm504, %v1141, %v1143
    %v1148 = vadd.f32 %v1124, %v1144
    %v1149 = vadd.f32 %v1125, %v1145
    %s1150 = sld [smem:[#allocation4 + $0x2d]]
    %s1151 = sld [smem:[#allocation4 + $0x5e]]
    %v1152 = vstv %s1150
    %v1153 = vmul.f32 %v1152, %v384
    %v1154 = vmul.f32 %v1152, %v385
    %v1155 = vstv %s1151
    %v1156 = vmul.f32 %v1155, %v389
    %v1157 = vmul.f32 %v1155, %v390
    %v1158 = vadd.f32 %v1153, %v1156
    %v1159 = vadd.f32 %v1154, %v1157
    %1162 = vrot.lane.b32.xlu0 %v1158, 32
    %v1163 = vpop.permute.xlu0 %1162
    %1164 = vrot.lane.b32.xlu0 %v1159, 32
    %v1165 = vpop.permute.xlu0 %1164
    %v1166 = vrot.slane %v1163, 1
    %v1167 = vrot.slane %v1165, 1
    %v1168 = vsel %vm529, %v1163, %v1166
    %v1169 = vsel %vm529, %v1165, %v1167
    %v1172 = vadd.f32 %v1148, %v1168
    %v1173 = vadd.f32 %v1149, %v1169
    %v1174 = vsel %vm1016, 1, 0
    %v1175 = vsel %vm1017, 1, 0
    %vm1176 = vcmp.eq.s32.totalorder %v1174, 1
    %vm1177 = vcmp.eq.s32.totalorder %v1175, 1
    %v1180 = vlaneseq
    %v1181 = vshrl.u32 %v1180, 7
    %v1182 = vsub.s32 0, %v1181
    %v1183 = vrot.slane %v1172, %v1182
    %v1184 = vlaneseq
    %v1185 = vshrl.u32 %v1184, 7
    %v1186 = vsub.s32 1, %v1185
    %v1187 = vrot.slane %v1172, %v1186
    %v1188 = vlaneseq
    %v1189 = vshrl.u32 %v1188, 7
    %v1190 = vsub.s32 2, %v1189
    %v1191 = vrot.slane %v1172, %v1190
    %v1192 = vlaneseq
    %v1193 = vshrl.u32 %v1192, 7
    %v1194 = vsub.s32 0, %v1193
    %v1195 = vrot.slane %v1173, %v1194
    %v1196 = vlaneseq
    %v1197 = vshrl.u32 %v1196, 7
    %v1198 = vsub.s32 1, %v1197
    %v1199 = vrot.slane %v1173, %v1198
    %v1200 = vlaneseq
    %v1201 = vshrl.u32 %v1200, 7
    %v1202 = vsub.s32 2, %v1201
    %v1203 = vrot.slane %v1173, %v1202
    %1204 = vrot.lane.b32.xlu0 %v1183, 125
    %v1205 = vpop.permute.xlu0 %1204
    %1206 = vrot.lane.b32.xlu0 %v1187, 125
    %v1207 = vpop.permute.xlu0 %1206
    %1208 = vrot.lane.b32.xlu0 %v1191, 125
    %v1209 = vpop.permute.xlu0 %1208
    %1210 = vrot.lane.b32.xlu0 %v1195, 125
    %v1211 = vpop.permute.xlu0 %1210
    %1212 = vrot.lane.b32.xlu0 %v1199, 125
    %v1213 = vpop.permute.xlu0 %1212
    %1214 = vrot.lane.b32.xlu0 %v1203, 125
    %v1215 = vpop.permute.xlu0 %1214
    %vm1216 = vcmask 1022976
    %v1217 = vsel %vm1216, %v1205, %v1207
    %v1218 = vsel %vm1216, %v1207, %v1209
    %v1219 = vsel %vm1216, %v1211, %v1213
    %v1220 = vsel %vm1216, %v1213, %v1215
    %v1225 = vsel %vm1176, %v1217, 0.0
    %v1226 = vsel %vm1177, %v1218, 0.0
    %v1227 = vsel %vm1176, %v1219, 0.0
    %v1228 = vsel %vm1177, %v1220, 0.0
    %v1229 = vadd.f32 %v1008, %v1225
    %v1230 = vadd.f32 %v1009, %v1226
    %v1231 = vadd.f32 %v1010, %v1227
    %v1232 = vadd.f32 %v1011, %v1228
    %vm1233 = vcmp.ge.s32.totalorder %v358, 4294967295
    %vm1234 = vcmp.ge.s32.totalorder %v359, 4294967295
    %vm1235 = vcmp.lt.s32.totalorder %v358, 15
    %vm1236 = vcmp.lt.s32.totalorder %v359, 15
    %vm1237 = vmand %vm1233, %vm1235
    %vm1238 = vmand %vm1234, %vm1236
    %s1239 = sld [smem:[#allocation4 + $0x4]]
    %s1240 = sld [smem:[#allocation4 + $0x35]]
    %v1241 = vstv %s1239
    %v1242 = vmul.f32 %v1241, %v384
    %v1243 = vmul.f32 %v1241, %v385
    %v1244 = vstv %s1240
    %v1245 = vmul.f32 %v1244, %v389
    %v1246 = vmul.f32 %v1244, %v390
    %v1247 = vadd.f32 %v1242, %v1245
    %v1248 = vadd.f32 %v1243, %v1246
    %v1249 = vadd.f32 %v1247, 0.0
    %v1250 = vadd.f32 %v1248, 0.0
    %s1251 = sld [smem:[#allocation4 + $0xb]]
    %s1252 = sld [smem:[#allocation4 + $0x3c]]
    %v1253 = vstv %s1251
    %v1254 = vmul.f32 %v1253, %v384
    %v1255 = vmul.f32 %v1253, %v385
    %v1256 = vstv %s1252
    %v1257 = vmul.f32 %v1256, %v389
    %v1258 = vmul.f32 %v1256, %v390
    %v1259 = vadd.f32 %v1254, %v1257
    %v1260 = vadd.f32 %v1255, %v1258
    %1263 = vrot.lane.b32.xlu0 %v1259, 112
    %v1264 = vpop.permute.xlu0 %1263
    %1265 = vrot.lane.b32.xlu0 %v1260, 112
    %v1266 = vpop.permute.xlu0 %1265
    %v1267 = vrot.slane %v1264, 1
    %v1268 = vrot.slane %v1266, 1
    %v1269 = vsel %vm404, %v1264, %v1267
    %v1270 = vsel %vm404, %v1266, %v1268
    %v1273 = vadd.f32 %v1249, %v1269
    %v1274 = vadd.f32 %v1250, %v1270
    %s1275 = sld [smem:[#allocation4 + $0x12]]
    %s1276 = sld [smem:[#allocation4 + $0x43]]
    %v1277 = vstv %s1275
    %v1278 = vmul.f32 %v1277, %v384
    %v1279 = vmul.f32 %v1277, %v385
    %v1280 = vstv %s1276
    %v1281 = vmul.f32 %v1280, %v389
    %v1282 = vmul.f32 %v1280, %v390
    %v1283 = vadd.f32 %v1278, %v1281
    %v1284 = vadd.f32 %v1279, %v1282
    %1287 = vrot.lane.b32.xlu0 %v1283, 96
    %v1288 = vpop.permute.xlu0 %1287
    %1289 = vrot.lane.b32.xlu0 %v1284, 96
    %v1290 = vpop.permute.xlu0 %1289
    %v1291 = vrot.slane %v1288, 1
    %v1292 = vrot.slane %v1290, 1
    %v1293 = vsel %vm429, %v1288, %v1291
    %v1294 = vsel %vm429, %v1290, %v1292
    %v1297 = vadd.f32 %v1273, %v1293
    %v1298 = vadd.f32 %v1274, %v1294
    %s1299 = sld [smem:[#allocation4 + $0x19]]
    %s1300 = sld [smem:[#allocation4 + $0x4a]]
    %v1301 = vstv %s1299
    %v1302 = vmul.f32 %v1301, %v384
    %v1303 = vmul.f32 %v1301, %v385
    %v1304 = vstv %s1300
    %v1305 = vmul.f32 %v1304, %v389
    %v1306 = vmul.f32 %v1304, %v390
    %v1307 = vadd.f32 %v1302, %v1305
    %v1308 = vadd.f32 %v1303, %v1306
    %1311 = vrot.lane.b32.xlu0 %v1307, 80
    %v1312 = vpop.permute.xlu0 %1311
    %1313 = vrot.lane.b32.xlu0 %v1308, 80
    %v1314 = vpop.permute.xlu0 %1313
    %v1315 = vrot.slane %v1312, 1
    %v1316 = vrot.slane %v1314, 1
    %v1317 = vsel %vm454, %v1312, %v1315
    %v1318 = vsel %vm454, %v1314, %v1316
    %v1321 = vadd.f32 %v1297, %v1317
    %v1322 = vadd.f32 %v1298, %v1318
    %s1323 = sld [smem:[#allocation4 + $0x20]]
    %s1324 = sld [smem:[#allocation4 + $0x51]]
    %v1325 = vstv %s1323
    %v1326 = vmul.f32 %v1325, %v384
    %v1327 = vmul.f32 %v1325, %v385
    %v1328 = vstv %s1324
    %v1329 = vmul.f32 %v1328, %v389
    %v1330 = vmul.f32 %v1328, %v390
    %v1331 = vadd.f32 %v1326, %v1329
    %v1332 = vadd.f32 %v1327, %v1330
    %1335 = vrot.lane.b32.xlu0 %v1331, 64
    %v1336 = vpop.permute.xlu0 %1335
    %1337 = vrot.lane.b32.xlu0 %v1332, 64
    %v1338 = vpop.permute.xlu0 %1337
    %v1339 = vrot.slane %v1336, 1
    %v1340 = vrot.slane %v1338, 1
    %v1341 = vsel %vm479, %v1336, %v1339
    %v1342 = vsel %vm479, %v1338, %v1340
    %v1345 = vadd.f32 %v1321, %v1341
    %v1346 = vadd.f32 %v1322, %v1342
    %s1347 = sld [smem:[#allocation4 + $0x27]]
    %s1348 = sld [smem:[#allocation4 + $0x58]]
    %v1349 = vstv %s1347
    %v1350 = vmul.f32 %v1349, %v384
    %v1351 = vmul.f32 %v1349, %v385
    %v1352 = vstv %s1348
    %v1353 = vmul.f32 %v1352, %v389
    %v1354 = vmul.f32 %v1352, %v390
    %v1355 = vadd.f32 %v1350, %v1353
    %v1356 = vadd.f32 %v1351, %v1354
    %1359 = vrot.lane.b32.xlu0 %v1355, 48
    %v1360 = vpop.permute.xlu0 %1359
    %1361 = vrot.lane.b32.xlu0 %v1356, 48
    %v1362 = vpop.permute.xlu0 %1361
    %v1363 = vrot.slane %v1360, 1
    %v1364 = vrot.slane %v1362, 1
    %v1365 = vsel %vm504, %v1360, %v1363
    %v1366 = vsel %vm504, %v1362, %v1364
    %v1369 = vadd.f32 %v1345, %v1365
    %v1370 = vadd.f32 %v1346, %v1366
    %s1371 = sld [smem:[#allocation4 + $0x2e]]
    %s1372 = sld [smem:[#allocation4 + $0x5f]]
    %v1373 = vstv %s1371
    %v1374 = vmul.f32 %v1373, %v384
    %v1375 = vmul.f32 %v1373, %v385
    %v1376 = vstv %s1372
    %v1377 = vmul.f32 %v1376, %v389
    %v1378 = vmul.f32 %v1376, %v390
    %v1379 = vadd.f32 %v1374, %v1377
    %v1380 = vadd.f32 %v1375, %v1378
    %1383 = vrot.lane.b32.xlu0 %v1379, 32
    %v1384 = vpop.permute.xlu0 %1383
    %1385 = vrot.lane.b32.xlu0 %v1380, 32
    %v1386 = vpop.permute.xlu0 %1385
    %v1387 = vrot.slane %v1384, 1
    %v1388 = vrot.slane %v1386, 1
    %v1389 = vsel %vm529, %v1384, %v1387
    %v1390 = vsel %vm529, %v1386, %v1388
    %v1393 = vadd.f32 %v1369, %v1389
    %v1394 = vadd.f32 %v1370, %v1390
    %v1395 = vsel %vm1237, 1, 0
    %v1396 = vsel %vm1238, 1, 0
    %vm1397 = vcmp.eq.s32.totalorder %v1395, 1
    %vm1398 = vcmp.eq.s32.totalorder %v1396, 1
    %v1401 = vlaneseq
    %v1402 = vshrl.u32 %v1401, 7
    %v1403 = vsub.s32 0, %v1402
    %v1404 = vrot.slane %v1393, %v1403
    %v1405 = vlaneseq
    %v1406 = vshrl.u32 %v1405, 7
    %v1407 = vsub.s32 1, %v1406
    %v1408 = vrot.slane %v1393, %v1407
    %v1409 = vlaneseq
    %v1410 = vshrl.u32 %v1409, 7
    %v1411 = vsub.s32 2, %v1410
    %v1412 = vrot.slane %v1393, %v1411
    %v1413 = vlaneseq
    %v1414 = vshrl.u32 %v1413, 7
    %v1415 = vsub.s32 0, %v1414
    %v1416 = vrot.slane %v1394, %v1415
    %v1417 = vlaneseq
    %v1418 = vshrl.u32 %v1417, 7
    %v1419 = vsub.s32 1, %v1418
    %v1420 = vrot.slane %v1394, %v1419
    %v1421 = vlaneseq
    %v1422 = vshrl.u32 %v1421, 7
    %v1423 = vsub.s32 2, %v1422
    %v1424 = vrot.slane %v1394, %v1423
    %1425 = vrot.lane.b32.xlu0 %v1404, 124
    %v1426 = vpop.permute.xlu0 %1425
    %1427 = vrot.lane.b32.xlu0 %v1408, 124
    %v1428 = vpop.permute.xlu0 %1427
    %1429 = vrot.lane.b32.xlu0 %v1412, 124
    %v1430 = vpop.permute.xlu0 %1429
    %1431 = vrot.lane.b32.xlu0 %v1416, 124
    %v1432 = vpop.permute.xlu0 %1431
    %1433 = vrot.lane.b32.xlu0 %v1420, 124
    %v1434 = vpop.permute.xlu0 %1433
    %1435 = vrot.lane.b32.xlu0 %v1424, 124
    %v1436 = vpop.permute.xlu0 %1435
    %vm1437 = vcmask 1014784
    %v1438 = vsel %vm1437, %v1426, %v1428
    %v1439 = vsel %vm1437, %v1428, %v1430
    %v1440 = vsel %vm1437, %v1432, %v1434
    %v1441 = vsel %vm1437, %v1434, %v1436
    %v1446 = vsel %vm1397, %v1438, 0.0
    %v1447 = vsel %vm1398, %v1439, 0.0
    %v1448 = vsel %vm1397, %v1440, 0.0
    %v1449 = vsel %vm1398, %v1441, 0.0
    %v1450 = vadd.f32 %v1229, %v1446
    %v1451 = vadd.f32 %v1230, %v1447
    %v1452 = vadd.f32 %v1231, %v1448
    %v1453 = vadd.f32 %v1232, %v1449
    %vm1454 = vcmp.ge.s32.totalorder %v358, 4294967294
    %vm1455 = vcmp.ge.s32.totalorder %v359, 4294967294
    %vm1456 = vcmp.lt.s32.totalorder %v358, 14
    %vm1457 = vcmp.lt.s32.totalorder %v359, 14
    %vm1458 = vmand %vm1454, %vm1456
    %vm1459 = vmand %vm1455, %vm1457
    %s1460 = sld [smem:[#allocation4 + $0x5]]
    %s1461 = sld [smem:[#allocation4 + $0x36]]
    %v1462 = vstv %s1460
    %v1463 = vmul.f32 %v1462, %v384
    %v1464 = vmul.f32 %v1462, %v385
    %v1465 = vstv %s1461
    %v1466 = vmul.f32 %v1465, %v389
    %v1467 = vmul.f32 %v1465, %v390
    %v1468 = vadd.f32 %v1463, %v1466
    %v1469 = vadd.f32 %v1464, %v1467
    %v1470 = vadd.f32 %v1468, 0.0
    %v1471 = vadd.f32 %v1469, 0.0
    %s1472 = sld [smem:[#allocation4 + $0xc]]
    %s1473 = sld [smem:[#allocation4 + $0x3d]]
    %v1474 = vstv %s1472
    %v1475 = vmul.f32 %v1474, %v384
    %v1476 = vmul.f32 %v1474, %v385
    %v1477 = vstv %s1473
    %v1478 = vmul.f32 %v1477, %v389
    %v1479 = vmul.f32 %v1477, %v390
    %v1480 = vadd.f32 %v1475, %v1478
    %v1481 = vadd.f32 %v1476, %v1479
    %1484 = vrot.lane.b32.xlu0 %v1480, 112
    %v1485 = vpop.permute.xlu0 %1484
    %1486 = vrot.lane.b32.xlu0 %v1481, 112
    %v1487 = vpop.permute.xlu0 %1486
    %v1488 = vrot.slane %v1485, 1
    %v1489 = vrot.slane %v1487, 1
    %v1490 = vsel %vm404, %v1485, %v1488
    %v1491 = vsel %vm404, %v1487, %v1489
    %v1494 = vadd.f32 %v1470, %v1490
    %v1495 = vadd.f32 %v1471, %v1491
    %s1496 = sld [smem:[#allocation4 + $0x13]]
    %s1497 = sld [smem:[#allocation4 + $0x44]]
    %v1498 = vstv %s1496
    %v1499 = vmul.f32 %v1498, %v384
    %v1500 = vmul.f32 %v1498, %v385
    %v1501 = vstv %s1497
    %v1502 = vmul.f32 %v1501, %v389
    %v1503 = vmul.f32 %v1501, %v390
    %v1504 = vadd.f32 %v1499, %v1502
    %v1505 = vadd.f32 %v1500, %v1503
    %1508 = vrot.lane.b32.xlu0 %v1504, 96
    %v1509 = vpop.permute.xlu0 %1508
    %1510 = vrot.lane.b32.xlu0 %v1505, 96
    %v1511 = vpop.permute.xlu0 %1510
    %v1512 = vrot.slane %v1509, 1
    %v1513 = vrot.slane %v1511, 1
    %v1514 = vsel %vm429, %v1509, %v1512
    %v1515 = vsel %vm429, %v1511, %v1513
    %v1518 = vadd.f32 %v1494, %v1514
    %v1519 = vadd.f32 %v1495, %v1515
    %s1520 = sld [smem:[#allocation4 + $0x1a]]
    %s1521 = sld [smem:[#allocation4 + $0x4b]]
    %v1522 = vstv %s1520
    %v1523 = vmul.f32 %v1522, %v384
    %v1524 = vmul.f32 %v1522, %v385
    %v1525 = vstv %s1521
    %v1526 = vmul.f32 %v1525, %v389
    %v1527 = vmul.f32 %v1525, %v390
    %v1528 = vadd.f32 %v1523, %v1526
    %v1529 = vadd.f32 %v1524, %v1527
    %1532 = vrot.lane.b32.xlu0 %v1528, 80
    %v1533 = vpop.permute.xlu0 %1532
    %1534 = vrot.lane.b32.xlu0 %v1529, 80
    %v1535 = vpop.permute.xlu0 %1534
    %v1536 = vrot.slane %v1533, 1
    %v1537 = vrot.slane %v1535, 1
    %v1538 = vsel %vm454, %v1533, %v1536
    %v1539 = vsel %vm454, %v1535, %v1537
    %v1542 = vadd.f32 %v1518, %v1538
    %v1543 = vadd.f32 %v1519, %v1539
    %s1544 = sld [smem:[#allocation4 + $0x21]]
    %s1545 = sld [smem:[#allocation4 + $0x52]]
    %v1546 = vstv %s1544
    %v1547 = vmul.f32 %v1546, %v384
    %v1548 = vmul.f32 %v1546, %v385
    %v1549 = vstv %s1545
    %v1550 = vmul.f32 %v1549, %v389
    %v1551 = vmul.f32 %v1549, %v390
    %v1552 = vadd.f32 %v1547, %v1550
    %v1553 = vadd.f32 %v1548, %v1551
    %1556 = vrot.lane.b32.xlu0 %v1552, 64
    %v1557 = vpop.permute.xlu0 %1556
    %1558 = vrot.lane.b32.xlu0 %v1553, 64
    %v1559 = vpop.permute.xlu0 %1558
    %v1560 = vrot.slane %v1557, 1
    %v1561 = vrot.slane %v1559, 1
    %v1562 = vsel %vm479, %v1557, %v1560
    %v1563 = vsel %vm479, %v1559, %v1561
    %v1566 = vadd.f32 %v1542, %v1562
    %v1567 = vadd.f32 %v1543, %v1563
    %s1568 = sld [smem:[#allocation4 + $0x28]]
    %s1569 = sld [smem:[#allocation4 + $0x59]]
    %v1570 = vstv %s1568
    %v1571 = vmul.f32 %v1570, %v384
    %v1572 = vmul.f32 %v1570, %v385
    %v1573 = vstv %s1569
    %v1574 = vmul.f32 %v1573, %v389
    %v1575 = vmul.f32 %v1573, %v390
    %v1576 = vadd.f32 %v1571, %v1574
    %v1577 = vadd.f32 %v1572, %v1575
    %1580 = vrot.lane.b32.xlu0 %v1576, 48
    %v1581 = vpop.permute.xlu0 %1580
    %1582 = vrot.lane.b32.xlu0 %v1577, 48
    %v1583 = vpop.permute.xlu0 %1582
    %v1584 = vrot.slane %v1581, 1
    %v1585 = vrot.slane %v1583, 1
    %v1586 = vsel %vm504, %v1581, %v1584
    %v1587 = vsel %vm504, %v1583, %v1585
    %v1590 = vadd.f32 %v1566, %v1586
    %v1591 = vadd.f32 %v1567, %v1587
    %s1592 = sld [smem:[#allocation4 + $0x2f]]
    %s1593 = sld [smem:[#allocation4 + $0x60]]
    %v1594 = vstv %s1592
    %v1595 = vmul.f32 %v1594, %v384
    %v1596 = vmul.f32 %v1594, %v385
    %v1597 = vstv %s1593
    %v1598 = vmul.f32 %v1597, %v389
    %v1599 = vmul.f32 %v1597, %v390
    %v1600 = vadd.f32 %v1595, %v1598
    %v1601 = vadd.f32 %v1596, %v1599
    %1604 = vrot.lane.b32.xlu0 %v1600, 32
    %v1605 = vpop.permute.xlu0 %1604
    %1606 = vrot.lane.b32.xlu0 %v1601, 32
    %v1607 = vpop.permute.xlu0 %1606
    %v1608 = vrot.slane %v1605, 1
    %v1609 = vrot.slane %v1607, 1
    %v1610 = vsel %vm529, %v1605, %v1608
    %v1611 = vsel %vm529, %v1607, %v1609
    %v1614 = vadd.f32 %v1590, %v1610
    %v1615 = vadd.f32 %v1591, %v1611
    %v1616 = vsel %vm1458, 1, 0
    %v1617 = vsel %vm1459, 1, 0
    %vm1618 = vcmp.eq.s32.totalorder %v1616, 1
    %vm1619 = vcmp.eq.s32.totalorder %v1617, 1
    %v1622 = vlaneseq
    %v1623 = vshrl.u32 %v1622, 7
    %v1624 = vsub.s32 0, %v1623
    %v1625 = vrot.slane %v1614, %v1624
    %v1626 = vlaneseq
    %v1627 = vshrl.u32 %v1626, 7
    %v1628 = vsub.s32 1, %v1627
    %v1629 = vrot.slane %v1614, %v1628
    %v1630 = vlaneseq
    %v1631 = vshrl.u32 %v1630, 7
    %v1632 = vsub.s32 2, %v1631
    %v1633 = vrot.slane %v1614, %v1632
    %v1634 = vlaneseq
    %v1635 = vshrl.u32 %v1634, 7
    %v1636 = vsub.s32 0, %v1635
    %v1637 = vrot.slane %v1615, %v1636
    %v1638 = vlaneseq
    %v1639 = vshrl.u32 %v1638, 7
    %v1640 = vsub.s32 1, %v1639
    %v1641 = vrot.slane %v1615, %v1640
    %v1642 = vlaneseq
    %v1643 = vshrl.u32 %v1642, 7
    %v1644 = vsub.s32 2, %v1643
    %v1645 = vrot.slane %v1615, %v1644
    %1646 = vrot.lane.b32.xlu0 %v1625, 123
    %v1647 = vpop.permute.xlu0 %1646
    %1648 = vrot.lane.b32.xlu0 %v1629, 123
    %v1649 = vpop.permute.xlu0 %1648
    %1650 = vrot.lane.b32.xlu0 %v1633, 123
    %v1651 = vpop.permute.xlu0 %1650
    %1652 = vrot.lane.b32.xlu0 %v1637, 123
    %v1653 = vpop.permute.xlu0 %1652
    %1654 = vrot.lane.b32.xlu0 %v1641, 123
    %v1655 = vpop.permute.xlu0 %1654
    %1656 = vrot.lane.b32.xlu0 %v1645, 123
    %v1657 = vpop.permute.xlu0 %1656
    %vm1658 = vcmask 1006592
    %v1659 = vsel %vm1658, %v1647, %v1649
    %v1660 = vsel %vm1658, %v1649, %v1651
    %v1661 = vsel %vm1658, %v1653, %v1655
    %v1662 = vsel %vm1658, %v1655, %v1657
    %v1667 = vsel %vm1618, %v1659, 0.0
    %v1668 = vsel %vm1619, %v1660, 0.0
    %v1669 = vsel %vm1618, %v1661, 0.0
    %v1670 = vsel %vm1619, %v1662, 0.0
    %v1671 = vadd.f32 %v1450, %v1667
    %v1672 = vadd.f32 %v1451, %v1668
    %v1673 = vadd.f32 %v1452, %v1669
    %v1674 = vadd.f32 %v1453, %v1670
    %vm1675 = vcmp.ge.s32.totalorder %v358, 4294967293
    %vm1676 = vcmp.ge.s32.totalorder %v359, 4294967293
    %vm1677 = vcmp.lt.s32.totalorder %v358, 13
    %vm1678 = vcmp.lt.s32.totalorder %v359, 13
    %vm1679 = vmand %vm1675, %vm1677
    %vm1680 = vmand %vm1676, %vm1678
    %s1681 = sld [smem:[#allocation4 + $0x6]]
    %s1682 = sld [smem:[#allocation4 + $0x37]]
    %v1683 = vstv %s1681
    %v1684 = vmul.f32 %v1683, %v384
    %v1685 = vmul.f32 %v1683, %v385
    %v1686 = vstv %s1682
    %v1687 = vmul.f32 %v1686, %v389
    %v1688 = vmul.f32 %v1686, %v390
    %v1689 = vadd.f32 %v1684, %v1687
    %v1690 = vadd.f32 %v1685, %v1688
    %v1691 = vadd.f32 %v1689, 0.0
    %v1692 = vadd.f32 %v1690, 0.0
    %s1693 = sld [smem:[#allocation4 + $0xd]]
    %s1694 = sld [smem:[#allocation4 + $0x3e]]
    %v1695 = vstv %s1693
    %v1696 = vmul.f32 %v1695, %v384
    %v1697 = vmul.f32 %v1695, %v385
    %v1698 = vstv %s1694
    %v1699 = vmul.f32 %v1698, %v389
    %v1700 = vmul.f32 %v1698, %v390
    %v1701 = vadd.f32 %v1696, %v1699
    %v1702 = vadd.f32 %v1697, %v1700
    %1705 = vrot.lane.b32.xlu0 %v1701, 112
    %v1706 = vpop.permute.xlu0 %1705
    %1707 = vrot.lane.b32.xlu0 %v1702, 112
    %v1708 = vpop.permute.xlu0 %1707
    %v1709 = vrot.slane %v1706, 1
    %v1710 = vrot.slane %v1708, 1
    %v1711 = vsel %vm404, %v1706, %v1709
    %v1712 = vsel %vm404, %v1708, %v1710
    %v1715 = vadd.f32 %v1691, %v1711
    %v1716 = vadd.f32 %v1692, %v1712
    %s1717 = sld [smem:[#allocation4 + $0x14]]
    %s1718 = sld [smem:[#allocation4 + $0x45]]
    %v1719 = vstv %s1717
    %v1720 = vmul.f32 %v1719, %v384
    %v1721 = vmul.f32 %v1719, %v385
    %v1722 = vstv %s1718
    %v1723 = vmul.f32 %v1722, %v389
    %v1724 = vmul.f32 %v1722, %v390
    %v1725 = vadd.f32 %v1720, %v1723
    %v1726 = vadd.f32 %v1721, %v1724
    %1729 = vrot.lane.b32.xlu0 %v1725, 96
    %v1730 = vpop.permute.xlu0 %1729
    %1731 = vrot.lane.b32.xlu0 %v1726, 96
    %v1732 = vpop.permute.xlu0 %1731
    %v1733 = vrot.slane %v1730, 1
    %v1734 = vrot.slane %v1732, 1
    %v1735 = vsel %vm429, %v1730, %v1733
    %v1736 = vsel %vm429, %v1732, %v1734
    %v1739 = vadd.f32 %v1715, %v1735
    %v1740 = vadd.f32 %v1716, %v1736
    %s1741 = sld [smem:[#allocation4 + $0x1b]]
    %s1742 = sld [smem:[#allocation4 + $0x4c]]
    %v1743 = vstv %s1741
    %v1744 = vmul.f32 %v1743, %v384
    %v1745 = vmul.f32 %v1743, %v385
    %v1746 = vstv %s1742
    %v1747 = vmul.f32 %v1746, %v389
    %v1748 = vmul.f32 %v1746, %v390
    %v1749 = vadd.f32 %v1744, %v1747
    %v1750 = vadd.f32 %v1745, %v1748
    %1753 = vrot.lane.b32.xlu0 %v1749, 80
    %v1754 = vpop.permute.xlu0 %1753
    %1755 = vrot.lane.b32.xlu0 %v1750, 80
    %v1756 = vpop.permute.xlu0 %1755
    %v1757 = vrot.slane %v1754, 1
    %v1758 = vrot.slane %v1756, 1
    %v1759 = vsel %vm454, %v1754, %v1757
    %v1760 = vsel %vm454, %v1756, %v1758
    %v1763 = vadd.f32 %v1739, %v1759
    %v1764 = vadd.f32 %v1740, %v1760
    %s1765 = sld [smem:[#allocation4 + $0x22]]
    %s1766 = sld [smem:[#allocation4 + $0x53]]
    %v1767 = vstv %s1765
    %v1768 = vmul.f32 %v1767, %v384
    %v1769 = vmul.f32 %v1767, %v385
    %v1770 = vstv %s1766
    %v1771 = vmul.f32 %v1770, %v389
    %v1772 = vmul.f32 %v1770, %v390
    %v1773 = vadd.f32 %v1768, %v1771
    %v1774 = vadd.f32 %v1769, %v1772
    %1777 = vrot.lane.b32.xlu0 %v1773, 64
    %v1778 = vpop.permute.xlu0 %1777
    %1779 = vrot.lane.b32.xlu0 %v1774, 64
    %v1780 = vpop.permute.xlu0 %1779
    %v1781 = vrot.slane %v1778, 1
    %v1782 = vrot.slane %v1780, 1
    %v1783 = vsel %vm479, %v1778, %v1781
    %v1784 = vsel %vm479, %v1780, %v1782
    %v1787 = vadd.f32 %v1763, %v1783
    %v1788 = vadd.f32 %v1764, %v1784
    %s1789 = sld [smem:[#allocation4 + $0x29]]
    %s1790 = sld [smem:[#allocation4 + $0x5a]]
    %v1791 = vstv %s1789
    %v1792 = vmul.f32 %v1791, %v384
    %v1793 = vmul.f32 %v1791, %v385
    %v1794 = vstv %s1790
    %v1795 = vmul.f32 %v1794, %v389
    %v1796 = vmul.f32 %v1794, %v390
    %v1797 = vadd.f32 %v1792, %v1795
    %v1798 = vadd.f32 %v1793, %v1796
    %1801 = vrot.lane.b32.xlu0 %v1797, 48
    %v1802 = vpop.permute.xlu0 %1801
    %1803 = vrot.lane.b32.xlu0 %v1798, 48
    %v1804 = vpop.permute.xlu0 %1803
    %v1805 = vrot.slane %v1802, 1
    %v1806 = vrot.slane %v1804, 1
    %v1807 = vsel %vm504, %v1802, %v1805
    %v1808 = vsel %vm504, %v1804, %v1806
    %v1811 = vadd.f32 %v1787, %v1807
    %v1812 = vadd.f32 %v1788, %v1808
    %s1813 = sld [smem:[#allocation4 + $0x30]]
    %s1814 = sld [smem:[#allocation4 + $0x61]]
    %v1815 = vstv %s1813
    %v1816 = vmul.f32 %v1815, %v384
    %v1817 = vmul.f32 %v1815, %v385
    %v1818 = vstv %s1814
    %v1819 = vmul.f32 %v1818, %v389
    %v1820 = vmul.f32 %v1818, %v390
    %v1821 = vadd.f32 %v1816, %v1819
    %v1822 = vadd.f32 %v1817, %v1820
    %1825 = vrot.lane.b32.xlu0 %v1821, 32
    %v1826 = vpop.permute.xlu0 %1825
    %1827 = vrot.lane.b32.xlu0 %v1822, 32
    %v1828 = vpop.permute.xlu0 %1827
    %v1829 = vrot.slane %v1826, 1
    %v1830 = vrot.slane %v1828, 1
    %v1831 = vsel %vm529, %v1826, %v1829
    %v1832 = vsel %vm529, %v1828, %v1830
    %v1835 = vadd.f32 %v1811, %v1831
    %v1836 = vadd.f32 %v1812, %v1832
    %v1837 = vsel %vm1679, 1, 0
    %v1838 = vsel %vm1680, 1, 0
    %vm1839 = vcmp.eq.s32.totalorder %v1837, 1
    %vm1840 = vcmp.eq.s32.totalorder %v1838, 1
    %v1843 = vlaneseq
    %v1844 = vshrl.u32 %v1843, 7
    %v1845 = vsub.s32 0, %v1844
    %v1846 = vrot.slane %v1835, %v1845
    %v1847 = vlaneseq
    %v1848 = vshrl.u32 %v1847, 7
    %v1849 = vsub.s32 1, %v1848
    %v1850 = vrot.slane %v1835, %v1849
    %v1851 = vlaneseq
    %v1852 = vshrl.u32 %v1851, 7
    %v1853 = vsub.s32 2, %v1852
    %v1854 = vrot.slane %v1835, %v1853
    %v1855 = vlaneseq
    %v1856 = vshrl.u32 %v1855, 7
    %v1857 = vsub.s32 0, %v1856
    %v1858 = vrot.slane %v1836, %v1857
    %v1859 = vlaneseq
    %v1860 = vshrl.u32 %v1859, 7
    %v1861 = vsub.s32 1, %v1860
    %v1862 = vrot.slane %v1836, %v1861
    %v1863 = vlaneseq
    %v1864 = vshrl.u32 %v1863, 7
    %v1865 = vsub.s32 2, %v1864
    %v1866 = vrot.slane %v1836, %v1865
    %1867 = vrot.lane.b32.xlu0 %v1846, 122
    %v1868 = vpop.permute.xlu0 %1867
    %1869 = vrot.lane.b32.xlu0 %v1850, 122
    %v1870 = vpop.permute.xlu0 %1869
    %1871 = vrot.lane.b32.xlu0 %v1854, 122
    %v1872 = vpop.permute.xlu0 %1871
    %1873 = vrot.lane.b32.xlu0 %v1858, 122
    %v1874 = vpop.permute.xlu0 %1873
    %1875 = vrot.lane.b32.xlu0 %v1862, 122
    %v1876 = vpop.permute.xlu0 %1875
    %1877 = vrot.lane.b32.xlu0 %v1866, 122
    %v1878 = vpop.permute.xlu0 %1877
    %vm1879 = vcmask 998400
    %v1880 = vsel %vm1879, %v1868, %v1870
    %v1881 = vsel %vm1879, %v1870, %v1872
    %v1882 = vsel %vm1879, %v1874, %v1876
    %v1883 = vsel %vm1879, %v1876, %v1878
    %v1888 = vsel %vm1839, %v1880, 0.0
    %v1889 = vsel %vm1840, %v1881, 0.0
    %v1890 = vsel %vm1839, %v1882, 0.0
    %v1891 = vsel %vm1840, %v1883, 0.0
    %v1892 = vadd.f32 %v1671, %v1888
    %v1893 = vadd.f32 %v1672, %v1889
    %v1894 = vadd.f32 %v1673, %v1890
    %v1895 = vadd.f32 %v1674, %v1891
    %v1896 = vsub.f32 0.0, %v1892
    %v1897 = vsub.f32 0.0, %v1893
    %v1898 = vsub.f32 0.0, %v1894
    %v1899 = vsub.f32 0.0, %v1895
    %v1900 = vmul.f32 %v1896, 1.442695
    %v1901 = vpow.pop %v1900
    %v1902 = vmul.f32 %v1897, 1.442695
    %v1903 = vpow.pop %v1902
    %v1904 = vmul.f32 %v1898, 1.442695
    %v1905 = vpow.pop %v1904
    %v1906 = vmul.f32 %v1899, 1.442695
    %v1907 = vpow.pop %v1906
    %v1908 = vadd.f32 %v1901, 1.0
    %v1909 = vadd.f32 %v1903, 1.0
    %v1910 = vadd.f32 %v1905, 1.0
    %v1911 = vadd.f32 %v1907, 1.0
    %v1912 = vrcp.pop %v1908
    %v1913 = vmul.f32 1.0, %v1912
    %v1914 = vrcp.pop %v1909
    %v1915 = vmul.f32 1.0, %v1914
    %v1916 = vrcp.pop %v1910
    %v1917 = vmul.f32 1.0, %v1916
    %v1918 = vrcp.pop %v1911
    %v1919 = vmul.f32 1.0, %v1918
    %v1920 = vlaneseq
    %v1921 = vshrl.u32 %v1920, 7
    %v1922 = vsub.s32 0, %v1921
    %v1923 = vrot.slane %v1913, %v1922
    %v1924 = vlaneseq
    %v1925 = vshrl.u32 %v1924, 7
    %v1926 = vsub.s32 0, %v1925
    %v1927 = vrot.slane %v1915, %v1926
    %v1928 = vlaneseq
    %v1929 = vshrl.u32 %v1928, 7
    %v1930 = vsub.s32 0, %v1929
    %v1931 = vrot.slane %v1917, %v1930
    %v1932 = vlaneseq
    %v1933 = vshrl.u32 %v1932, 7
    %v1934 = vsub.s32 0, %v1933
    %v1935 = vrot.slane %v1919, %v1934
    %v1936 = vmul.f32 %v161, %v1923
    %v1937 = vmul.f32 %v162, %v1927
    %v1938 = vmul.f32 %v163, %v1923
    %v1939 = vmul.f32 %v164, %v1927
    %v1940 = vmul.f32 %v165, %v1931
    %v1941 = vmul.f32 %v166, %v1935
    %v1942 = vmul.f32 %v167, %v1931
    %v1943 = vmul.f32 %v168, %v1935
    %1944 = vst [vmem:[%s4] sm:$0xff] %v1936
    %1945 = vst [vmem:[%s4 + $0x8] sm:$0xff] %v1937
    %1946 = vst [vmem:[%s4 + $0x10] sm:$0xff] %v1938
    %1947 = vst [vmem:[%s4 + $0x18] sm:$0xff] %v1939
    %1948 = vst [vmem:[%s4 + $0x20] sm:$0xff] %v1940
    %1949 = vst [vmem:[%s4 + $0x28] sm:$0xff] %v1941
    %1950 = vst [vmem:[%s4 + $0x30] sm:$0xff] %v1942
    %1951 = vst [vmem:[%s4 + $0x38] sm:$0xff] %v1943
    // Predicated region
    $region22: #{cbam_forward.1} parent=1 // pred_check
      _
    $region23: #{cbam_forward.1} parent=1 // pred_check_branch
      %1953 = sbr.rel (0) target = $region25
    $region24: #{cbam_forward.1} parent=1 // pred_region
      _
    $region25: #{cbam_forward.1} parent=1 // pred_fallthru
      _
    // Predicated region
    $region26: #{cbam_forward.1} parent=1 // pred_check
      _
    $region27: #{cbam_forward.1} parent=1 // pred_check_branch
      %1955 = sbr.rel (0) target = $region29
    $region28: #{cbam_forward.1} parent=1 // pred_region
      _
    $region29: #{cbam_forward.1} parent=1 // pred_fallthru
      _
    %1956 = vsyncpa [#allocation5], 1

</llo_original>
